<compile_context>
chip_gen: v7x
topology: tpu7x:2x2x1
jax: 0.10.0
libtpu: 0.0.40
codegen_flags: <defaults>
</compile_context>

<pallas_src>
import functools

import numpy as np
import jax
import jax.numpy as jnp
from jax.experimental import pallas as pl
from jax.experimental.pallas import tpu as pltpu


def _node_area_kernel(nodes_ref, xlo_ref, xhi_ref, ylo_ref, yhi_ref, util_ref,
                      out_ref, *, use_bf16_matmul):
    # nodes_ref: (8, TN)  rows = [x_min, y_min, x_max, y_max, scale, 0, 0, 0]
    # xlo/xhi:   (BX, 1)  bin edges along x (bins on the sublane axis)
    # ylo/yhi:   (BY, 1)
    # util_ref:  (BX, BY)
    # out_ref:   (1, TN)  lane-dense row of per-node adjusted areas
    x_min = nodes_ref[0:1, :]          # (1, TN)
    y_min = nodes_ref[1:2, :]
    x_max = nodes_ref[2:3, :]
    y_max = nodes_ref[3:4, :]
    scale = nodes_ref[4:5, :]          # mask * pin_w / (nsx*nsy*unit_pin_capacity)

    # Per-bin overlaps, bins on sublanes / nodes on lanes.
    ox = jnp.maximum(jnp.minimum(x_max, xhi_ref[...]) -
                     jnp.maximum(x_min, xlo_ref[...]), 0.0)      # (BX, TN)
    oy = jnp.maximum(jnp.minimum(y_max, yhi_ref[...]) -
                     jnp.maximum(y_min, ylo_ref[...]), 0.0)      # (BY, TN)

    # area_n = sum_{bx,by} ox[bx,n] * oy[by,n] * U[bx,by]
    #        = sum_bx ox[bx,n] * (U @ oy)[bx,n]
    util = util_ref[...]
    if use_bf16_matmul:                # large-bin-grid regime: ~3x MXU throughput
        util = util.astype(jnp.bfloat16)
        oy = oy.astype(jnp.bfloat16)
    t = jnp.dot(util, oy, preferred_element_type=jnp.float32)    # (BX, TN) on MXU
    area = jnp.sum(ox * t, axis=0, keepdims=True)                # (1, TN)

    # Epilogue is a single lane-dense multiply (scale precomputed on host;
    # padded / non-FLOP-LUT lanes carry scale == 0).
    out_ref[...] = area * scale


def _choose_tile_n(n, requested, num_bins_x, num_bins_y,
                   vmem_budget_bytes=36 * 1024 * 1024):
    """Pick a lane-aligned node tile that fits the VMEM budget (v7x-safe)."""
    # Per-lane VMEM bytes per step: slab double-buffer (2*8 rows) + ox/t (2*BX)
    # + oy (BY) intermediates + output double-buffer (2 rows), all f32.
    bytes_per_lane = 4 * (2 * 8 + 2 * num_bins_x + num_bins_y + 2)
    cap = max(128, (vmem_budget_bytes // bytes_per_lane) // 128 * 128)
    tile = min(int(requested), cap)
    # Keep >= 2 grid steps when there are enough nodes (v7x has 2 TensorCores;
    # a 1-step grid leaves one idle). Cost elsewhere: one extra ~0.35us step.
    if n > 256:
        two_step = ((pl.cdiv(n, 2) + 127) // 128) * 128
        tile = min(tile, max(256, two_step))
    return max(128, (tile // 128) * 128)


def compute_node_area_from_pin_map(pos, node_size_x, node_size_y, utilization_map,
                                   pin_weights, flop_lut_indices, *,
                                   num_movable_nodes, xl, yl, xh, yh,
                                   num_bins_x, num_bins_y, unit_pin_capacity,
                                   tile_n=2048, use_bf16_matmul=None):
    """pos is the flat [x; y] tensor of length 2*num_nodes (PyTorch convention)."""
    num_nodes = pos.shape[0] // 2
    n = int(num_movable_nodes)
    f32 = jnp.float32

    tile_n = _choose_tile_n(n, tile_n, num_bins_x, num_bins_y)
    n_pad = pl.cdiv(n, tile_n) * tile_n

    if use_bf16_matmul is None:
        # Only worth it in the MXU-bound (big-bin-grid) regime.
        use_bf16_matmul = (num_bins_x * num_bins_y) >= 256 * 256

    bin_size_x = (xh - xl) / num_bins_x
    bin_size_y = (yh - yl) / num_bins_y

    # ---- host-side precompute: x/y extents and the final per-node scale ----
    x_min = pos[:n].astype(f32)
    y_min = pos[num_nodes:num_nodes + n].astype(f32)
    nsx = node_size_x[:n].astype(f32)
    nsy = node_size_y[:n].astype(f32)
    pw = pin_weights[:n].astype(f32)
    mask = jnp.zeros((n,), f32).at[jnp.asarray(flop_lut_indices)].set(1.0)
    denom = nsx * nsy * jnp.asarray(unit_pin_capacity, f32)
    is_fl = mask > 0.0
    # Non-FLOP/LUT nodes -> 0 (safe even if their size is 0); FLOP/LUT nodes
    # divide by their true denominator (matches reference divide-by-zero).
    scale = jnp.where(is_fl, pw / jnp.where(is_fl, denom, 1.0), 0.0)

    # One stack + one pad -> a single lane-dense (8, n_pad) slab (one DMA/step).
    slab = jnp.stack([x_min, y_min, x_min + nsx, y_min + nsy, scale], axis=0)
    slab = jnp.pad(slab, ((0, 3), (0, n_pad - n)))                # (8, n_pad)

    # ---- precomputed bin edges (constant-index inputs, DMA'd once) ----
    bx = np.arange(num_bins_x, dtype=np.float64)
    by = np.arange(num_bins_y, dtype=np.float64)
    x_lo = jnp.asarray((xl + bx * bin_size_x).reshape(num_bins_x, 1), f32)
    x_hi = jnp.asarray((xl + (bx + 1.0) * bin_size_x).reshape(num_bins_x, 1), f32)
    y_lo = jnp.asarray((yl + by * bin_size_y).reshape(num_bins_y, 1), f32)
    y_hi = jnp.asarray((yl + (by + 1.0) * bin_size_y).reshape(num_bins_y, 1), f32)
    util = utilization_map.astype(f32)

    kernel = functools.partial(_node_area_kernel,
                               use_bf16_matmul=bool(use_bf16_matmul))

    # VMEM budget estimate -> scoped limit (clamped; v7x only has 64 MiB/TC).
    per_step_bytes = 4 * tile_n * (2 * 8 + 2 * num_bins_x + num_bins_y + 2)
    const_bytes = 4 * (num_bins_x * num_bins_y + 2 * (num_bins_x + num_bins_y)) * 2
    vmem_limit = int(min(max(32 * 1024 * 1024,
                             1.5 * (per_step_bytes + const_bytes)),
                         56 * 1024 * 1024))

    flops = int(2 * n_pad * num_bins_x * num_bins_y
                + 8 * n_pad * (num_bins_x + num_bins_y))
    bytes_accessed = int(4 * (9 * n_pad + num_bins_x * num_bins_y
                              + 2 * (num_bins_x + num_bins_y)))

    def _run(single_buffer_consts):
        const_kw = {}
        if single_buffer_consts:
            # Constant-index inputs are DMA'd once; no need for double buffers.
            const_kw = dict(pipeline_mode=pl.Buffered(1))
        const_map = lambda i: (0, 0)
        node_spec = pl.BlockSpec((8, tile_n), lambda i: (0, i))
        xedge_spec = pl.BlockSpec((num_bins_x, 1), const_map, **const_kw)
        yedge_spec = pl.BlockSpec((num_bins_y, 1), const_map, **const_kw)
        util_spec = pl.BlockSpec((num_bins_x, num_bins_y), const_map, **const_kw)
        out_spec = pl.BlockSpec((1, tile_n), lambda i: (0, i))

        return pl.pallas_call(
            kernel,
            out_shape=jax.ShapeDtypeStruct((1, n_pad), f32),
            grid_spec=pltpu.PrefetchScalarGridSpec(
                num_scalar_prefetch=0,
                grid=(n_pad // tile_n,),
                in_specs=[node_spec, xedge_spec, xedge_spec, yedge_spec,
                          yedge_spec, util_spec],
                out_specs=out_spec,
            ),
            compiler_params=pltpu.CompilerParams(
                dimension_semantics=("parallel",),
                vmem_limit_bytes=vmem_limit),
            cost_estimate=pl.CostEstimate(flops=flops, transcendentals=0,
                                          bytes_accessed=bytes_accessed),
        )(slab, x_lo, x_hi, y_lo, y_hi, util)

    try:
        out = _run(True)
    except Exception:
        # Fallback for jax versions that reject pipeline_mode=pl.Buffered(1);
        # any genuine kernel error will re-raise from the default-buffered path.
        out = _run(False)
    return out[0, :n]


def _reference_numpy(pos, node_size_x, node_size_y, utilization_map,
                     pin_weights, flop_lut_indices, *, num_movable_nodes,
                     xl, yl, xh, yh, num_bins_x, num_bins_y, unit_pin_capacity):
    """Loop-faithful port of the DREAMPlace C++ kernel + pin-map scaling."""
    pos = np.asarray(pos, np.float64)
    nsx = np.asarray(node_size_x, np.float64)
    nsy = np.asarray(node_size_y, np.float64)
    util = np.asarray(utilization_map, np.float64)
    pw = np.asarray(pin_weights, np.float64)
    num_nodes = pos.shape[0] // 2
    bsx = (xh - xl) / num_bins_x
    bsy = (yh - yl) / num_bins_y
    out = np.zeros(num_movable_nodes, np.float64)
    for i in np.asarray(flop_lut_indices):
        x_min = pos[i]
        x_max = x_min + nsx[i]
        y_min = pos[num_nodes + i]
        y_max = y_min + nsy[i]
        bxl = max(int((x_min - xl) / bsx), 0)
        bxh = min(int((x_max - xl) / bsx) + 1, num_bins_x)
        byl = max(int((y_min - yl) / bsy), 0)
        byh = min(int((y_max - yl) / bsy) + 1, num_bins_y)
        area = 0.0
        for bx in range(bxl, bxh):
            ovx = min(x_max, xl + (bx + 1) * bsx) - max(x_min, xl + bx * bsx)
            for by in range(byl, byh):
                ovy = min(y_max, yl + (by + 1) * bsy) - max(y_min, yl + by * bsy)
                area += ovx * ovy * util[bx, by]
        out[i] = area * pw[i] / (nsx[i] * nsy[i] * unit_pin_capacity)
    return out


if __name__ == "__main__":
    key = jax.random.PRNGKey(0)
    k1, k2, k3, k4, k5, k6 = jax.random.split(key, 6)

    # Placement region / bin grid (small, consistent with the module).
    xl, yl, xh, yh = 0.0, 0.0, 16.0, 16.0
    num_bins_x, num_bins_y = 16, 16
    num_nodes = 700              # total nodes (movable + fixed) -> pos has 2*num_nodes
    num_movable_nodes = 640
    unit_pin_capacity = 0.5

    # Deterministic synthetic inputs.
    node_size_x = jax.random.uniform(k1, (num_nodes,), jnp.float32, 0.5, 3.0)
    node_size_y = jax.random.uniform(k2, (num_nodes,), jnp.float32, 0.5, 3.0)
    pos_x = jax.random.uniform(k3, (num_nodes,), jnp.float32) * (xh - node_size_x - xl) + xl
    pos_y = jax.random.uniform(k4, (num_nodes,), jnp.float32) * (yh - node_size_y - yl) + yl
    pos = jnp.concatenate([pos_x, pos_y])                       # PyTorch flat [x; y]
    utilization_map = jax.random.uniform(k5, (num_bins_x, num_bins_y), jnp.float32,
                                         0.1, 2.0)

    # pin_weights derived the same way as from flat_node2pin_start_map diffs.
    pin_counts = jax.random.randint(k6, (num_nodes,), 1, 7).astype(jnp.int32)
    flat_node2pin_start_map = jnp.concatenate(
        [jnp.zeros((1,), jnp.int32), jnp.cumsum(pin_counts)])
    pin_weights = (flat_node2pin_start_map[1:num_movable_nodes + 1] -
                   flat_node2pin_start_map[:num_movable_nodes])

    # FLOP/LUT instances = even-indexed movable nodes.
    flop_lut_indices = jnp.arange(0, num_movable_nodes, 2, dtype=jnp.int32)

    out = compute_node_area_from_pin_map(
        pos, node_size_x, node_size_y, utilization_map, pin_weights,
        flop_lut_indices,
        num_movable_nodes=num_movable_nodes, xl=xl, yl=yl, xh=xh, yh=yh,
        num_bins_x=num_bins_x, num_bins_y=num_bins_y,
        unit_pin_capacity=unit_pin_capacity)
    out = jax.block_until_ready(out)

    ref = _reference_numpy(
        pos, node_size_x, node_size_y, utilization_map, pin_weights,
        flop_lut_indices,
        num_movable_nodes=num_movable_nodes, xl=xl, yl=yl, xh=xh, yh=yh,
        num_bins_x=num_bins_x, num_bins_y=num_bins_y,
        unit_pin_capacity=unit_pin_capacity)

    np.testing.assert_allclose(np.asarray(out), ref, rtol=1e-4, atol=1e-4)
    print("KERNEL_OK")
</pallas_src>

<mosaic_0001>
module attributes {stable_mosaic.version = 11 : i64} {
  func.func @_node_area_kernel(%arg0: i32, %arg1: memref<8x384xf32, #tpu.memory_space<vmem>>, %arg2: memref<16x1xf32, #tpu.memory_space<vmem>>, %arg3: memref<16x1xf32, #tpu.memory_space<vmem>>, %arg4: memref<16x1xf32, #tpu.memory_space<vmem>>, %arg5: memref<16x1xf32, #tpu.memory_space<vmem>>, %arg6: memref<16x16xf32, #tpu.memory_space<vmem>>, %arg7: memref<1x384xf32, #tpu.memory_space<vmem>>) attributes {dimension_semantics = [#tpu.dimension_semantics<parallel>], iteration_bounds = array<i64: 2>, scalar_prefetch = 0 : i64, scratch_operands = 0 : i64, tpu.core_type = #tpu.core_type<tc>, window_params = [{transform_indices = @transform_0, window_bounds = array<i64: 8, 384>}, {pipeline_mode = #tpu.pipeline_mode<synchronous>, transform_indices = @transform_1, window_bounds = array<i64: 16, 1>}, {pipeline_mode = #tpu.pipeline_mode<synchronous>, transform_indices = @transform_2, window_bounds = array<i64: 16, 1>}, {pipeline_mode = #tpu.pipeline_mode<synchronous>, transform_indices = @transform_3, window_bounds = array<i64: 16, 1>}, {pipeline_mode = #tpu.pipeline_mode<synchronous>, transform_indices = @transform_4, window_bounds = array<i64: 16, 1>}, {pipeline_mode = #tpu.pipeline_mode<synchronous>, transform_indices = @transform_5, window_bounds = array<i64: 16, 16>}, {transform_indices = @transform_6, window_bounds = array<i64: 1, 384>}]} {
    %c0 = arith.constant 0 : index
    %c0_0 = arith.constant 0 : index
    %0 = vector.load %arg1[%c0, %c0_0] : memref<8x384xf32, #tpu.memory_space<vmem>>, vector<1x384xf32>
    %c1 = arith.constant 1 : index
    %c0_1 = arith.constant 0 : index
    %1 = vector.load %arg1[%c1, %c0_1] : memref<8x384xf32, #tpu.memory_space<vmem>>, vector<1x384xf32>
    %c2 = arith.constant 2 : index
    %c0_2 = arith.constant 0 : index
    %2 = vector.load %arg1[%c2, %c0_2] : memref<8x384xf32, #tpu.memory_space<vmem>>, vector<1x384xf32>
    %c3 = arith.constant 3 : index
    %c0_3 = arith.constant 0 : index
    %3 = vector.load %arg1[%c3, %c0_3] : memref<8x384xf32, #tpu.memory_space<vmem>>, vector<1x384xf32>
    %c4 = arith.constant 4 : index
    %c0_4 = arith.constant 0 : index
    %4 = vector.load %arg1[%c4, %c0_4] : memref<8x384xf32, #tpu.memory_space<vmem>>, vector<1x384xf32>
    %c0_5 = arith.constant 0 : index
    %c0_6 = arith.constant 0 : index
    %5 = vector.load %arg3[%c0_5, %c0_6] : memref<16x1xf32, #tpu.memory_space<vmem>>, vector<16x1xf32>
    %6 = vector.broadcast %2 : vector<1x384xf32> to vector<16x384xf32>
    %7 = vector.broadcast %5 : vector<16x1xf32> to vector<16x384xf32>
    %8 = arith.minimumf %6, %7 : vector<16x384xf32>
    %c0_7 = arith.constant 0 : index
    %c0_8 = arith.constant 0 : index
    %9 = vector.load %arg2[%c0_7, %c0_8] : memref<16x1xf32, #tpu.memory_space<vmem>>, vector<16x1xf32>
    %10 = vector.broadcast %0 : vector<1x384xf32> to vector<16x384xf32>
    %11 = vector.broadcast %9 : vector<16x1xf32> to vector<16x384xf32>
    %12 = arith.maximumf %10, %11 : vector<16x384xf32>
    %13 = arith.subf %8, %12 : vector<16x384xf32>
    %cst = arith.constant 0.000000e+00 : f32
    %14 = vector.broadcast %cst : f32 to vector<16x384xf32>
    %15 = arith.maximumf %13, %14 : vector<16x384xf32>
    %c0_9 = arith.constant 0 : index
    %c0_10 = arith.constant 0 : index
    %16 = vector.load %arg5[%c0_9, %c0_10] : memref<16x1xf32, #tpu.memory_space<vmem>>, vector<16x1xf32>
    %17 = vector.broadcast %3 : vector<1x384xf32> to vector<16x384xf32>
    %18 = vector.broadcast %16 : vector<16x1xf32> to vector<16x384xf32>
    %19 = arith.minimumf %17, %18 : vector<16x384xf32>
    %c0_11 = arith.constant 0 : index
    %c0_12 = arith.constant 0 : index
    %20 = vector.load %arg4[%c0_11, %c0_12] : memref<16x1xf32, #tpu.memory_space<vmem>>, vector<16x1xf32>
    %21 = vector.broadcast %1 : vector<1x384xf32> to vector<16x384xf32>
    %22 = vector.broadcast %20 : vector<16x1xf32> to vector<16x384xf32>
    %23 = arith.maximumf %21, %22 : vector<16x384xf32>
    %24 = arith.subf %19, %23 : vector<16x384xf32>
    %cst_13 = arith.constant 0.000000e+00 : f32
    %25 = vector.broadcast %cst_13 : f32 to vector<16x384xf32>
    %26 = arith.maximumf %24, %25 : vector<16x384xf32>
    %c0_14 = arith.constant 0 : index
    %c0_15 = arith.constant 0 : index
    %27 = vector.load %arg6[%c0_14, %c0_15] : memref<16x16xf32, #tpu.memory_space<vmem>>, vector<16x16xf32>
    %cst_16 = arith.constant dense<0.000000e+00> : vector<16x384xf32>
    %28 = tpu.matmul %27, %26, %cst_16 {dimension_numbers = #tpu.dot_dimension_numbers<[1], [0], [0], [1], [0, 0, 1, 1], [], []>} : vector<16x16xf32>, vector<16x384xf32>, vector<16x384xf32> -> vector<16x384xf32>
    %29 = arith.mulf %15, %28 : vector<16x384xf32>
    %cst_17 = arith.constant dense<0.000000e+00> : vector<384xf32>
    %30 = vector.multi_reduction <add>, %29, %cst_17 [0] : vector<16x384xf32> to vector<384xf32>
    %31 = vector.shape_cast %30 : vector<384xf32> to vector<1x384xf32>
    %32 = arith.mulf %31, %4 : vector<1x384xf32>
    %c0_18 = arith.constant 0 : index
    %c0_19 = arith.constant 0 : index
    %33 = vector.load %arg7[%c0_18, %c0_19] : memref<1x384xf32, #tpu.memory_space<vmem>>, vector<1x384xf32>
    tpu.vector_store %arg7[%c0_18, %c0_19], %32 {strides = array<i32>} : memref<1x384xf32, #tpu.memory_space<vmem>>, vector<1x384xf32>,
    return
  }
  func.func @transform_0(%arg0: i32) -> (i32, i32) {
    %c0_i32 = arith.constant 0 : i32
    %c0_i32_0 = arith.constant 0 : i32
    return %c0_i32, %arg0 : i32, i32
  }
  func.func @transform_1(%arg0: i32) -> (i32, i32) {
    %c0_i32 = arith.constant 0 : i32
    %c0_i32_0 = arith.constant 0 : i32
    %c0_i32_1 = arith.constant 0 : i32
    return %c0_i32, %c0_i32_0 : i32, i32
  }
  func.func @transform_2(%arg0: i32) -> (i32, i32) {
    %c0_i32 = arith.constant 0 : i32
    %c0_i32_0 = arith.constant 0 : i32
    %c0_i32_1 = arith.constant 0 : i32
    return %c0_i32, %c0_i32_0 : i32, i32
  }
  func.func @transform_3(%arg0: i32) -> (i32, i32) {
    %c0_i32 = arith.constant 0 : i32
    %c0_i32_0 = arith.constant 0 : i32
    %c0_i32_1 = arith.constant 0 : i32
    return %c0_i32, %c0_i32_0 : i32, i32
  }
  func.func @transform_4(%arg0: i32) -> (i32, i32) {
    %c0_i32 = arith.constant 0 : i32
    %c0_i32_0 = arith.constant 0 : i32
    %c0_i32_1 = arith.constant 0 : i32
    return %c0_i32, %c0_i32_0 : i32, i32
  }
  func.func @transform_5(%arg0: i32) -> (i32, i32) {
    %c0_i32 = arith.constant 0 : i32
    %c0_i32_0 = arith.constant 0 : i32
    %c0_i32_1 = arith.constant 0 : i32
    return %c0_i32, %c0_i32_0 : i32, i32
  }
  func.func @transform_6(%arg0: i32) -> (i32, i32) {
    %c0_i32 = arith.constant 0 : i32
    %c0_i32_0 = arith.constant 0 : i32
    return %c0_i32, %arg0 : i32, i32
  }
}

module attributes {stable_mosaic.version = 11 : i64} {
  func.func @_node_area_kernel(%arg0: i32, %arg1: memref<8x384xf32, #tpu.memory_space<vmem>>, %arg2: memref<16x1xf32, #tpu.memory_space<vmem>>, %arg3: memref<16x1xf32, #tpu.memory_space<vmem>>, %arg4: memref<16x1xf32, #tpu.memory_space<vmem>>, %arg5: memref<16x1xf32, #tpu.memory_space<vmem>>, %arg6: memref<16x16xf32, #tpu.memory_space<vmem>>, %arg7: memref<1x384xf32, #tpu.memory_space<vmem>>) attributes {dimension_semantics = [#tpu.dimension_semantics<parallel>], iteration_bounds = array<i64: 2>, scalar_prefetch = 0 : i64, scratch_operands = 0 : i64, tpu.core_type = #tpu.core_type<tc>, window_params = [{transform_indices = @transform_0, window_bounds = array<i64: 8, 384>}, {pipeline_mode = #tpu.pipeline_mode<synchronous>, transform_indices = @transform_1, window_bounds = array<i64: 16, 1>}, {pipeline_mode = #tpu.pipeline_mode<synchronous>, transform_indices = @transform_2, window_bounds = array<i64: 16, 1>}, {pipeline_mode = #tpu.pipeline_mode<synchronous>, transform_indices = @transform_3, window_bounds = array<i64: 16, 1>}, {pipeline_mode = #tpu.pipeline_mode<synchronous>, transform_indices = @transform_4, window_bounds = array<i64: 16, 1>}, {pipeline_mode = #tpu.pipeline_mode<synchronous>, transform_indices = @transform_5, window_bounds = array<i64: 16, 16>}, {transform_indices = @transform_6, window_bounds = array<i64: 1, 384>}]} {
    %c0 = arith.constant 0 : index
    %c0_0 = arith.constant 0 : index
    %0 = vector.load %arg1[%c0, %c0_0] : memref<8x384xf32, #tpu.memory_space<vmem>>, vector<1x384xf32>
    %c1 = arith.constant 1 : index
    %c0_1 = arith.constant 0 : index
    %1 = vector.load %arg1[%c1, %c0_1] : memref<8x384xf32, #tpu.memory_space<vmem>>, vector<1x384xf32>
    %c2 = arith.constant 2 : index
    %c0_2 = arith.constant 0 : index
    %2 = vector.load %arg1[%c2, %c0_2] : memref<8x384xf32, #tpu.memory_space<vmem>>, vector<1x384xf32>
    %c3 = arith.constant 3 : index
    %c0_3 = arith.constant 0 : index
    %3 = vector.load %arg1[%c3, %c0_3] : memref<8x384xf32, #tpu.memory_space<vmem>>, vector<1x384xf32>
    %c4 = arith.constant 4 : index
    %c0_4 = arith.constant 0 : index
    %4 = vector.load %arg1[%c4, %c0_4] : memref<8x384xf32, #tpu.memory_space<vmem>>, vector<1x384xf32>
    %c0_5 = arith.constant 0 : index
    %c0_6 = arith.constant 0 : index
    %5 = vector.load %arg3[%c0_5, %c0_6] : memref<16x1xf32, #tpu.memory_space<vmem>>, vector<16x1xf32>
    %6 = vector.broadcast %2 : vector<1x384xf32> to vector<16x384xf32>
    %7 = vector.broadcast %5 : vector<16x1xf32> to vector<16x384xf32>
    %8 = arith.minimumf %6, %7 : vector<16x384xf32>
    %c0_7 = arith.constant 0 : index
    %c0_8 = arith.constant 0 : index
    %9 = vector.load %arg2[%c0_7, %c0_8] : memref<16x1xf32, #tpu.memory_space<vmem>>, vector<16x1xf32>
    %10 = vector.broadcast %0 : vector<1x384xf32> to vector<16x384xf32>
    %11 = vector.broadcast %9 : vector<16x1xf32> to vector<16x384xf32>
    %12 = arith.maximumf %10, %11 : vector<16x384xf32>
    %13 = arith.subf %8, %12 : vector<16x384xf32>
    %cst = arith.constant 0.000000e+00 : f32
    %14 = vector.broadcast %cst : f32 to vector<16x384xf32>
    %15 = arith.maximumf %13, %14 : vector<16x384xf32>
    %c0_9 = arith.constant 0 : index
    %c0_10 = arith.constant 0 : index
    %16 = vector.load %arg5[%c0_9, %c0_10] : memref<16x1xf32, #tpu.memory_space<vmem>>, vector<16x1xf32>
    %17 = vector.broadcast %3 : vector<1x384xf32> to vector<16x384xf32>
    %18 = vector.broadcast %16 : vector<16x1xf32> to vector<16x384xf32>
    %19 = arith.minimumf %17, %18 : vector<16x384xf32>
    %c0_11 = arith.constant 0 : index
    %c0_12 = arith.constant 0 : index
    %20 = vector.load %arg4[%c0_11, %c0_12] : memref<16x1xf32, #tpu.memory_space<vmem>>, vector<16x1xf32>
    %21 = vector.broadcast %1 : vector<1x384xf32> to vector<16x384xf32>
    %22 = vector.broadcast %20 : vector<16x1xf32> to vector<16x384xf32>
    %23 = arith.maximumf %21, %22 : vector<16x384xf32>
    %24 = arith.subf %19, %23 : vector<16x384xf32>
    %cst_13 = arith.constant 0.000000e+00 : f32
    %25 = vector.broadcast %cst_13 : f32 to vector<16x384xf32>
    %26 = arith.maximumf %24, %25 : vector<16x384xf32>
    %c0_14 = arith.constant 0 : index
    %c0_15 = arith.constant 0 : index
    %27 = vector.load %arg6[%c0_14, %c0_15] : memref<16x16xf32, #tpu.memory_space<vmem>>, vector<16x16xf32>
    %cst_16 = arith.constant dense<0.000000e+00> : vector<16x384xf32>
    %28 = tpu.matmul %27, %26, %cst_16 {dimension_numbers = #tpu.dot_dimension_numbers<[1], [0], [0], [1], [0, 0, 1, 1], [], []>} : vector<16x16xf32>, vector<16x384xf32>, vector<16x384xf32> -> vector<16x384xf32>
    %29 = arith.mulf %15, %28 : vector<16x384xf32>
    %cst_17 = arith.constant dense<0.000000e+00> : vector<384xf32>
    %30 = vector.multi_reduction <add>, %29, %cst_17 [0] : vector<16x384xf32> to vector<384xf32>
    %31 = vector.shape_cast %30 : vector<384xf32> to vector<1x384xf32>
    %32 = arith.mulf %31, %4 : vector<1x384xf32>
    %c0_18 = arith.constant 0 : index
    %c0_19 = arith.constant 0 : index
    %33 = vector.load %arg7[%c0_18, %c0_19] : memref<1x384xf32, #tpu.memory_space<vmem>>, vector<1x384xf32>
    tpu.vector_store %arg7[%c0_18, %c0_19], %32 {strides = array<i32>} : memref<1x384xf32, #tpu.memory_space<vmem>>, vector<1x384xf32>,
    return
  }
  func.func @transform_0(%arg0: i32) -> (i32, i32) {
    %c0_i32 = arith.constant 0 : i32
    %c0_i32_0 = arith.constant 0 : i32
    return %c0_i32, %arg0 : i32, i32
  }
  func.func @transform_1(%arg0: i32) -> (i32, i32) {
    %c0_i32 = arith.constant 0 : i32
    %c0_i32_0 = arith.constant 0 : i32
    %c0_i32_1 = arith.constant 0 : i32
    return %c0_i32, %c0_i32_0 : i32, i32
  }
  func.func @transform_2(%arg0: i32) -> (i32, i32) {
    %c0_i32 = arith.constant 0 : i32
    %c0_i32_0 = arith.constant 0 : i32
    %c0_i32_1 = arith.constant 0 : i32
    return %c0_i32, %c0_i32_0 : i32, i32
  }
  func.func @transform_3(%arg0: i32) -> (i32, i32) {
    %c0_i32 = arith.constant 0 : i32
    %c0_i32_0 = arith.constant 0 : i32
    %c0_i32_1 = arith.constant 0 : i32
    return %c0_i32, %c0_i32_0 : i32, i32
  }
  func.func @transform_4(%arg0: i32) -> (i32, i32) {
    %c0_i32 = arith.constant 0 : i32
    %c0_i32_0 = arith.constant 0 : i32
    %c0_i32_1 = arith.constant 0 : i32
    return %c0_i32, %c0_i32_0 : i32, i32
  }
  func.func @transform_5(%arg0: i32) -> (i32, i32) {
    %c0_i32 = arith.constant 0 : i32
    %c0_i32_0 = arith.constant 0 : i32
    %c0_i32_1 = arith.constant 0 : i32
    return %c0_i32, %c0_i32_0 : i32, i32
  }
  func.func @transform_6(%arg0: i32) -> (i32, i32) {
    %c0_i32 = arith.constant 0 : i32
    %c0_i32_0 = arith.constant 0 : i32
    return %c0_i32, %arg0 : i32, i32
  }
}

</mosaic_0001>

<llo_original>
// kernel: tpu_custom_call.1
$region0: #{tpu_custom_call.1}
  #allocation0 [shape = 'u32[]', space=smem, size = 0x4, offset = 0x4, fixed_abs, tag = 'smem constant byte address 0x4 - core index']
  #allocation1 [shape = 'u32[144,128]{1,0:T(1,128)}', space=vmem, size = 0x12000, scoped, tag = 'internal scratch']
  %s0 = inlined_call_operand.vmem [shape: f32[8,768], index: 0, kind: input, shape index: {}]
  %s1 = inlined_call_operand.vmem [shape: f32[16,1], index: 1, kind: input, shape index: {}]
  %s2 = inlined_call_operand.vmem [shape: f32[16,1], index: 2, kind: input, shape index: {}]
  %s3 = inlined_call_operand.vmem [shape: f32[16,1], index: 3, kind: input, shape index: {}]
  %s4 = inlined_call_operand.vmem [shape: f32[16,1], index: 4, kind: input, shape index: {}]
  %s5 = inlined_call_operand.vmem [shape: f32[16,16], index: 5, kind: input, shape index: {}]
  %s6 = inlined_call_operand.hbm [shape: f32[1,768], index: 6, kind: output, shape index: {}]
  %s7 = sld [smem:[#allocation0]]
  $region57: #{tpu_custom_call.1} parent=0
    _
  %s9 = ssub.s32 1, %s7
  %s10 = scalar_select 0, %s9, %s7
  $region1: #{tpu_custom_call.1} parent=0
    #allocation2 [shape = 'u8[3072]{0}', space=vmem, size = 0xc00, scoped, tag = 'output window, operand 0']
    #allocation3 [shape = 's32[2]{0}', space=sflag, size = 0x8, scoped, tag = 'scoped memory for tpu_custom_call.1']
    %11 = vsyncpa [#allocation3], 0
    %s12 = scalar_lea.sflag [#allocation3], 1
    %13 = vsyncpa %s12, 0
    loop: start=0, step=1, limit=4
    $region2: #{tpu_custom_call.1} parent=1 // loop_pre_header
      _
    $region3: #{tpu_custom_call.1} parent=1 // loop_header
      %s15 = sphi 0, %s19
      %p16 = scmp.ge.s32.totalorder %s15, 4
      %s25 = sphi 0, %s27
      %s28 = sphi 0, %s25
      %s29 = sphi 0, %s28
      %s45 = sphi 0, %s29
      %s49 = sphi 0, %s49
      %s51 = sphi 0, %s49
      %s52 = sphi 0, %s51
      %s66 = sphi 0, %s52
      %s70 = sphi 0, %s70
      %s72 = sphi 0, %s70
      %s73 = sphi 0, %s72
      %s87 = sphi 0, %s73
      %s91 = sphi 0, %s91
      %s93 = sphi 0, %s91
      %s94 = sphi 0, %s93
      %s108 = sphi 0, %s94
      %s112 = sphi 0, %s112
      %s114 = sphi 0, %s112
      %s115 = sphi 0, %s114
      %s129 = sphi 0, %s115
      %s133 = sphi 0, %s133
      %s135 = sphi 0, %s133
      %s136 = sphi 0, %s135
      %s150 = sphi 0, %s136
      %s156 = sphi 0, %s158
      %s159 = sphi 0, %s156
      %s160 = sphi 0, %s159
      %s176 = sphi 0, %s160
    $region4: #{tpu_custom_call.1} parent=1 // loop_header_branch
      %18 = sbr.rel (%p16) target = $region8
    $region5: #{tpu_custom_call.1} parent=1 // loop_body
      %s20 = ssub.s32 %s15, 1
      %s21 = ssub.s32 %s15, 2
      %s22 = sadd.s32 %s15, 1
      %s23 = ssub.s32 %s15, %s22
      %p24 = scmp.eq.s32.totalorder %s23, 0
      %s26 = sadd.s32 %s25, 1
      %s27 = scalar_select %p24, %s25, %s26
      %p30 = pneg %p24
      %p31 = scmp.eq.s32.totalorder %s15, 1
      %p32 = por %p30, %p31
      %p33 = scmp.ne.s32.totalorder %s25, %s28
      %p34 = scmp.eq.s32.totalorder %s15, 0
      %p35 = por %p33, %p34
      %p36 = scmp.ne.s32.totalorder %s25, %s28
      %p37 = scmp.eq.s32.totalorder %s20, 1
      %p38 = por %p36, %p37
      %p39 = scmp.ne.s32.totalorder %s28, %s29
      %p40 = scmp.eq.s32.totalorder %s20, 0
      %p41 = por %p39, %p40
      %p42 = scmp.ne.s32.totalorder %s28, %s29
      %p43 = scmp.eq.s32.totalorder %s21, 1
      %p44 = por %p42, %p43
      %p46 = scmp.ne.s32.totalorder %s29, %s45
      %p47 = scmp.eq.s32.totalorder %s21, 0
      %p48 = por %p46, %p47
      %s50 = sadd.s32 %s49, 1
      %p53 = scmp.eq.s32.totalorder %s15, 1
      %p54 = scmp.ne.s32.totalorder %s49, %s51
      %p55 = scmp.eq.s32.totalorder %s15, 0
      %p56 = por %p54, %p55
      %p57 = scmp.ne.s32.totalorder %s49, %s51
      %p58 = scmp.eq.s32.totalorder %s20, 1
      %p59 = por %p57, %p58
      %p60 = scmp.ne.s32.totalorder %s51, %s52
      %p61 = scmp.eq.s32.totalorder %s20, 0
      %p62 = por %p60, %p61
      %p63 = scmp.ne.s32.totalorder %s51, %s52
      %p64 = scmp.eq.s32.totalorder %s21, 1
      %p65 = por %p63, %p64
      %p67 = scmp.ne.s32.totalorder %s52, %s66
      %p68 = scmp.eq.s32.totalorder %s21, 0
      %p69 = por %p67, %p68
      %s71 = sadd.s32 %s70, 1
      %p74 = scmp.eq.s32.totalorder %s15, 1
      %p75 = scmp.ne.s32.totalorder %s70, %s72
      %p76 = scmp.eq.s32.totalorder %s15, 0
      %p77 = por %p75, %p76
      %p78 = scmp.ne.s32.totalorder %s70, %s72
      %p79 = scmp.eq.s32.totalorder %s20, 1
      %p80 = por %p78, %p79
      %p81 = scmp.ne.s32.totalorder %s72, %s73
      %p82 = scmp.eq.s32.totalorder %s20, 0
      %p83 = por %p81, %p82
      %p84 = scmp.ne.s32.totalorder %s72, %s73
      %p85 = scmp.eq.s32.totalorder %s21, 1
      %p86 = por %p84, %p85
      %p88 = scmp.ne.s32.totalorder %s73, %s87
      %p89 = scmp.eq.s32.totalorder %s21, 0
      %p90 = por %p88, %p89
      %s92 = sadd.s32 %s91, 1
      %p95 = scmp.eq.s32.totalorder %s15, 1
      %p96 = scmp.ne.s32.totalorder %s91, %s93
      %p97 = scmp.eq.s32.totalorder %s15, 0
      %p98 = por %p96, %p97
      %p99 = scmp.ne.s32.totalorder %s91, %s93
      %p100 = scmp.eq.s32.totalorder %s20, 1
      %p101 = por %p99, %p100
      %p102 = scmp.ne.s32.totalorder %s93, %s94
      %p103 = scmp.eq.s32.totalorder %s20, 0
      %p104 = por %p102, %p103
      %p105 = scmp.ne.s32.totalorder %s93, %s94
      %p106 = scmp.eq.s32.totalorder %s21, 1
      %p107 = por %p105, %p106
      %p109 = scmp.ne.s32.totalorder %s94, %s108
      %p110 = scmp.eq.s32.totalorder %s21, 0
      %p111 = por %p109, %p110
      %s113 = sadd.s32 %s112, 1
      %p116 = scmp.eq.s32.totalorder %s15, 1
      %p117 = scmp.ne.s32.totalorder %s112, %s114
      %p118 = scmp.eq.s32.totalorder %s15, 0
      %p119 = por %p117, %p118
      %p120 = scmp.ne.s32.totalorder %s112, %s114
      %p121 = scmp.eq.s32.totalorder %s20, 1
      %p122 = por %p120, %p121
      %p123 = scmp.ne.s32.totalorder %s114, %s115
      %p124 = scmp.eq.s32.totalorder %s20, 0
      %p125 = por %p123, %p124
      %p126 = scmp.ne.s32.totalorder %s114, %s115
      %p127 = scmp.eq.s32.totalorder %s21, 1
      %p128 = por %p126, %p127
      %p130 = scmp.ne.s32.totalorder %s115, %s129
      %p131 = scmp.eq.s32.totalorder %s21, 0
      %p132 = por %p130, %p131
      %s134 = sadd.s32 %s133, 1
      %p137 = scmp.eq.s32.totalorder %s15, 1
      %p138 = scmp.ne.s32.totalorder %s133, %s135
      %p139 = scmp.eq.s32.totalorder %s15, 0
      %p140 = por %p138, %p139
      %p141 = scmp.ne.s32.totalorder %s133, %s135
      %p142 = scmp.eq.s32.totalorder %s20, 1
      %p143 = por %p141, %p142
      %p144 = scmp.ne.s32.totalorder %s135, %s136
      %p145 = scmp.eq.s32.totalorder %s20, 0
      %p146 = por %p144, %p145
      %p147 = scmp.ne.s32.totalorder %s135, %s136
      %p148 = scmp.eq.s32.totalorder %s21, 1
      %p149 = por %p147, %p148
      %p151 = scmp.ne.s32.totalorder %s136, %s150
      %p152 = scmp.eq.s32.totalorder %s21, 0
      %p153 = por %p151, %p152
      %s154 = ssub.s32 %s15, %s22
      %p155 = scmp.eq.s32.totalorder %s154, 0
      %s157 = sadd.s32 %s156, 1
      %s158 = scalar_select %p155, %s156, %s157
      %p161 = pneg %p155
      %p162 = scmp.eq.s32.totalorder %s15, 1
      %p163 = por %p161, %p162
      %p164 = scmp.ne.s32.totalorder %s156, %s159
      %p165 = scmp.eq.s32.totalorder %s15, 0
      %p166 = por %p164, %p165
      %p167 = scmp.ne.s32.totalorder %s156, %s159
      %p168 = scmp.eq.s32.totalorder %s20, 1
      %p169 = por %p167, %p168
      %p170 = scmp.ne.s32.totalorder %s159, %s160
      %p171 = scmp.eq.s32.totalorder %s20, 0
      %p172 = por %p170, %p171
      %p173 = scmp.ne.s32.totalorder %s159, %s160
      %p174 = scmp.eq.s32.totalorder %s21, 1
      %p175 = por %p173, %p174
      %p177 = scmp.ne.s32.totalorder %s160, %s176
      %p178 = scmp.eq.s32.totalorder %s21, 0
      %p179 = por %p177, %p178
      %p180 = scmp.le.s32.totalorder 1, %s15
      %p181 = scmp.lt.s32.totalorder %s15, 3
      %p182 = pnand %p180, %p181
      %p183 = pneg %p182
      // Predicated region
      $region9: #{tpu_custom_call.1} parent=5 // pred_check
        _
      $region10: #{tpu_custom_call.1} parent=5 // pred_check_branch
        %185 = sbr.rel (%p182) target = $region12
      $region11: #{tpu_custom_call.1} parent=5 // pred_region
        %s186 = ssub.s32 %s15, 1
        // Predicated region
        $region13: #{tpu_custom_call.1} parent=11 // pred_check
          %p187 = pneg %p62
        $region14: #{tpu_custom_call.1} parent=11 // pred_check_branch
          %189 = sbr.rel (%p187) target = $region16
        $region15: #{tpu_custom_call.1} parent=11 // pred_region
          _
        $region16: #{tpu_custom_call.1} parent=11 // pred_fallthru
          _
        // Predicated region
        $region17: #{tpu_custom_call.1} parent=11 // pred_check
          %p190 = pneg %p83
        $region18: #{tpu_custom_call.1} parent=11 // pred_check_branch
          %192 = sbr.rel (%p190) target = $region20
        $region19: #{tpu_custom_call.1} parent=11 // pred_region
          _
        $region20: #{tpu_custom_call.1} parent=11 // pred_fallthru
          _
        // Predicated region
        $region21: #{tpu_custom_call.1} parent=11 // pred_check
          %p193 = pneg %p104
        $region22: #{tpu_custom_call.1} parent=11 // pred_check_branch
          %195 = sbr.rel (%p193) target = $region24
        $region23: #{tpu_custom_call.1} parent=11 // pred_region
          _
        $region24: #{tpu_custom_call.1} parent=11 // pred_fallthru
          _
        // Predicated region
        $region25: #{tpu_custom_call.1} parent=11 // pred_check
          %p196 = pneg %p125
        $region26: #{tpu_custom_call.1} parent=11 // pred_check_branch
          %198 = sbr.rel (%p196) target = $region28
        $region27: #{tpu_custom_call.1} parent=11 // pred_region
          _
        $region28: #{tpu_custom_call.1} parent=11 // pred_fallthru
          _
        // Predicated region
        $region29: #{tpu_custom_call.1} parent=11 // pred_check
          %p199 = pneg %p146
        $region30: #{tpu_custom_call.1} parent=11 // pred_check_branch
          %201 = sbr.rel (%p199) target = $region32
        $region31: #{tpu_custom_call.1} parent=11 // pred_region
          _
        $region32: #{tpu_custom_call.1} parent=11 // pred_fallthru
          _
      $region12: #{tpu_custom_call.1} parent=5 // pred_fallthru
        _
      %p202 = scmp.lt.s32.totalorder %s15, 2
      // Predicated region
      $region33: #{tpu_custom_call.1} parent=5 // pred_check
        %p203 = pneg %p202
      $region34: #{tpu_custom_call.1} parent=5 // pred_check_branch
        %205 = sbr.rel (%p203) target = $region36
      $region35: #{tpu_custom_call.1} parent=5 // pred_region
        // Predicated region
        $region37: #{tpu_custom_call.1} parent=35 // pred_check
          %p206 = pneg %p35
        $region38: #{tpu_custom_call.1} parent=35 // pred_check_branch
          %208 = sbr.rel (%p206) target = $region40
        $region39: #{tpu_custom_call.1} parent=35 // pred_region
          %s209 = smul.u32 3, %s15
          %p210 = scmp.lt.s32.totalorder %s209, 5
          %s211 = scalar_select %p210, %s209, 5
          %s212 = smul.addr %s211, 8
          %s213 = scalar_lea.vmem %s0, %s212
          %s214 = smul.u32 3, %s15
        $region40: #{tpu_custom_call.1} parent=35 // pred_fallthru
          _
      $region36: #{tpu_custom_call.1} parent=5 // pred_fallthru
        _
      %p215 = scmp.le.s32.totalorder 1, %s15
      %p216 = scmp.lt.s32.totalorder %s15, 3
      %p217 = pnand %p215, %p216
      %p218 = pneg %p217
      // Predicated region
      $region41: #{tpu_custom_call.1} parent=5 // pred_check
        _
      $region42: #{tpu_custom_call.1} parent=5 // pred_check_branch
        %220 = sbr.rel (%p217) target = $region44
      $region43: #{tpu_custom_call.1} parent=5 // pred_region
        %s221 = ssub.s32 %s15, 1
        %s222 = smul.u32 3, %s20
        %p223 = scmp.lt.s32.totalorder %s222, 5
        %s224 = scalar_select %p223, %s222, 5
        %s225 = smul.addr %s224, 8
        %s226 = scalar_lea.vmem %s0, %s225
        %p227 = pneg %p41
        %p228 = pneg %p38
        %p229 = pneg %p62
        %p230 = pneg %p59
        %p231 = pneg %p83
        %p232 = pneg %p80
        %p233 = pneg %p104
        %p234 = pneg %p101
        %p235 = pneg %p125
        %p236 = pneg %p122
        %p237 = pneg %p146
        %p238 = pneg %p143
        %p239 = pneg %p172
        %p240 = pneg %p169
        %s241 = sand.u32 %s159, 1
        %s242 = scalar_lea.sflag [#allocation3], %s241
        %s243 = sand.u32 %s159, 1
        %s244 = smul.addr %s243, 3
        %s245 = scalar_lea.vmem [#allocation2], %s244
        %s246 = smul.u32 3, %s20
        %p247 = scmp.lt.s32.totalorder %s246, 5
        %s248 = scalar_select %p247, %s246, 5
        %s249 = smul.addr %s248, 8
        %s250 = scalar_lea.vmem %s0, %s249
        %s251 = smul.u32 3, %s20
        %s252 = smul.u32 3, %s20
        %v253 = vld [vmem:[%s250] ss:$8 sm:$0x7]
        %s254 = scalar_lea.vmem %s250, 1
        %v255 = vld [vmem:[%s254] ss:$8 sm:$0x7]
        %s256 = scalar_lea.vmem %s250, 2
        %v257 = vld [vmem:[%s256] ss:$8 sm:$0x7]
        %s258 = scalar_lea.vmem %s250, 3
        %v259 = vld [vmem:[%s258] ss:$8 sm:$0x7]
        %s260 = scalar_lea.vmem %s250, 4
        %v261 = vld [vmem:[%s260] ss:$8 sm:$0x7]
        %v262 = vld [vmem:[%s2] sm:$0xff]
        %v263 = vld [vmem:[%s2 + $0x8] sm:$0xff]
        %v265 = vlaneseq
        %v266 = vshrl.u32 %v265, 7
        %v267 = vsub.s32 0, %v266
        %v268 = vrot.slane %v257, %v267
        %v269 = vlaneseq
        %v270 = vshrl.u32 %v269, 7
        %v271 = vsub.s32 1, %v270
        %v272 = vrot.slane %v257, %v271
        %v273 = vlaneseq
        %v274 = vshrl.u32 %v273, 7
        %v275 = vsub.s32 2, %v274
        %v276 = vrot.slane %v257, %v275
        %281 = vset.pattern.permute.xlu0 0
        %282 = vperm.xlu0 %281, %v262
        %v283 = vpop.permute.xlu0 %282
        %286 = vset.pattern.permute.xlu0 0
        %287 = vperm.xlu0 %286, %v263
        %v288 = vpop.permute.xlu0 %287
        %v290 = vmin.f32 %v268, %v283
        %v291 = vmin.f32 %v272, %v283
        %v292 = vmin.f32 %v276, %v283
        %v293 = vmin.f32 %v268, %v288
        %v294 = vmin.f32 %v272, %v288
        %v295 = vmin.f32 %v276, %v288
        %v296 = vld [vmem:[%s1] sm:$0xff]
        %v297 = vld [vmem:[%s1 + $0x8] sm:$0xff]
        %v299 = vlaneseq
        %v300 = vshrl.u32 %v299, 7
        %v301 = vsub.s32 0, %v300
        %v302 = vrot.slane %v253, %v301
        %v303 = vlaneseq
        %v304 = vshrl.u32 %v303, 7
        %v305 = vsub.s32 1, %v304
        %v306 = vrot.slane %v253, %v305
        %v307 = vlaneseq
        %v308 = vshrl.u32 %v307, 7
        %v309 = vsub.s32 2, %v308
        %v310 = vrot.slane %v253, %v309
        %315 = vset.pattern.permute.xlu0 0
        %316 = vperm.xlu0 %315, %v296
        %v317 = vpop.permute.xlu0 %316
        %320 = vset.pattern.permute.xlu0 0
        %321 = vperm.xlu0 %320, %v297
        %v322 = vpop.permute.xlu0 %321
        %v324 = vmax.f32 %v302, %v317
        %v325 = vmax.f32 %v306, %v317
        %v326 = vmax.f32 %v310, %v317
        %v327 = vmax.f32 %v302, %v322
        %v328 = vmax.f32 %v306, %v322
        %v329 = vmax.f32 %v310, %v322
        %v330 = vsub.f32 %v290, %v324
        %v331 = vsub.f32 %v291, %v325
        %v332 = vsub.f32 %v292, %v326
        %v333 = vsub.f32 %v293, %v327
        %v334 = vsub.f32 %v294, %v328
        %v335 = vsub.f32 %v295, %v329
        %v336 = vmax.f32 %v330, 0.0
        %v337 = vmax.f32 %v331, 0.0
        %v338 = vmax.f32 %v332, 0.0
        %v339 = vmax.f32 %v333, 0.0
        %v340 = vmax.f32 %v334, 0.0
        %v341 = vmax.f32 %v335, 0.0
        %v342 = vld [vmem:[%s4] sm:$0xff]
        %v343 = vld [vmem:[%s4 + $0x8] sm:$0xff]
        %v345 = vlaneseq
        %v346 = vshrl.u32 %v345, 7
        %v347 = vsub.s32 0, %v346
        %v348 = vrot.slane %v259, %v347
        %v349 = vlaneseq
        %v350 = vshrl.u32 %v349, 7
        %v351 = vsub.s32 1, %v350
        %v352 = vrot.slane %v259, %v351
        %v353 = vlaneseq
        %v354 = vshrl.u32 %v353, 7
        %v355 = vsub.s32 2, %v354
        %v356 = vrot.slane %v259, %v355
        %361 = vset.pattern.permute.xlu0 0
        %362 = vperm.xlu0 %361, %v342
        %v363 = vpop.permute.xlu0 %362
        %366 = vset.pattern.permute.xlu0 0
        %367 = vperm.xlu0 %366, %v343
        %v368 = vpop.permute.xlu0 %367
        %v370 = vmin.f32 %v348, %v363
        %v371 = vmin.f32 %v352, %v363
        %v372 = vmin.f32 %v356, %v363
        %v373 = vmin.f32 %v348, %v368
        %v374 = vmin.f32 %v352, %v368
        %v375 = vmin.f32 %v356, %v368
        %v376 = vld [vmem:[%s3] sm:$0xff]
        %v377 = vld [vmem:[%s3 + $0x8] sm:$0xff]
        %v379 = vlaneseq
        %v380 = vshrl.u32 %v379, 7
        %v381 = vsub.s32 0, %v380
        %v382 = vrot.slane %v255, %v381
        %v383 = vlaneseq
        %v384 = vshrl.u32 %v383, 7
        %v385 = vsub.s32 1, %v384
        %v386 = vrot.slane %v255, %v385
        %v387 = vlaneseq
        %v388 = vshrl.u32 %v387, 7
        %v389 = vsub.s32 2, %v388
        %v390 = vrot.slane %v255, %v389
        %395 = vset.pattern.permute.xlu0 0
        %396 = vperm.xlu0 %395, %v376
        %v397 = vpop.permute.xlu0 %396
        %400 = vset.pattern.permute.xlu0 0
        %401 = vperm.xlu0 %400, %v377
        %v402 = vpop.permute.xlu0 %401
        %v404 = vmax.f32 %v382, %v397
        %v405 = vmax.f32 %v386, %v397
        %v406 = vmax.f32 %v390, %v397
        %v407 = vmax.f32 %v382, %v402
        %v408 = vmax.f32 %v386, %v402
        %v409 = vmax.f32 %v390, %v402
        %v410 = vsub.f32 %v370, %v404
        %v411 = vsub.f32 %v371, %v405
        %v412 = vsub.f32 %v372, %v406
        %v413 = vsub.f32 %v373, %v407
        %v414 = vsub.f32 %v374, %v408
        %v415 = vsub.f32 %v375, %v409
        %v416 = vmax.f32 %v410, 0.0
        %v417 = vmax.f32 %v411, 0.0
        %v418 = vmax.f32 %v412, 0.0
        %v419 = vmax.f32 %v413, 0.0
        %v420 = vmax.f32 %v414, 0.0
        %v421 = vmax.f32 %v415, 0.0
        %v422 = vld [vmem:[%s5] sm:$0xff]
        %v423 = vld [vmem:[%s5 + $0x8] sm:$0xff]
        %vm424 = vcmask 130048
        %v426 = vsel %vm424, %v422, 0
        %v429 = vsel %vm424, %v423, 0
        %431 = vmatprep.subr.mxu0 %v417
        %432 = vmatpush1.msra.mxu0 %v416
        %433 = vmatprep.subr.mxu0 %v420
        %434 = vmatpush1.msra.mxu0 %v419
        %435 = vmatprep.subr.mxu0 0.0
        %436 = vmatpush1.msra.mxu0 0.0
        %437 = vmatprep.subr.mxu0 0.0
        %438 = vmatpush1.msra.mxu0 0.0
        %439 = vmatprep.subr.mxu0 0.0
        %440 = vmatpush1.msra.mxu0 0.0
        %441 = vmatprep.subr.mxu0 0.0
        %442 = vmatpush1.msra.mxu0 0.0
        %443 = vmatprep.subr.mxu0 0.0
        %444 = vmatpush1.msra.mxu0 0.0
        %445 = vmatprep.subr.mxu0 0.0
        %446 = vmatpush1.msra.mxu0 0.0
        %447 = vmatprep.subr.mxu0 0.0
        %448 = vmatpush1.msra.mxu0 0.0
        %449 = vmatprep.subr.mxu0 0.0
        %450 = vmatpush1.msra.mxu0 0.0
        %451 = vmatprep.subr.mxu0 0.0
        %452 = vmatpush1.msra.mxu0 0.0
        %453 = vmatprep.subr.mxu0 0.0
        %454 = vmatpush1.msra.mxu0 0.0
        %455 = vmatprep.subr.mxu0 0.0
        %456 = vmatpush1.msra.mxu0 0.0
        %457 = vmatprep.subr.mxu0 0.0
        %458 = vmatpush1.msra.mxu0 0.0
        %459 = vmatprep.subr.mxu0 0.0
        %460 = vmatpush1.msra.mxu0 0.0
        %461 = vmatprep.subr.mxu0 0.0
        %462 = vmatpush1.msra.mxu0 0.0
        %463 = vmatprep.subr.mxu0 0.0
        %464 = vmatpush1.msra.mxu0 0.0
        %465 = vmatprep.subr.mxu0 0.0
        %466 = vmatpush1.msra.mxu0 0.0
        %467 = vmatprep.subr.mxu0 0.0
        %468 = vmatpush1.msra.mxu0 0.0
        %469 = vmatprep.subr.mxu0 0.0
        %470 = vmatpush1.msra.mxu0 0.0
        %471 = vmatprep.subr.mxu0 0.0
        %472 = vmatpush1.msra.mxu0 0.0
        %473 = vmatprep.subr.mxu0 0.0
        %474 = vmatpush1.msra.mxu0 0.0
        %475 = vmatprep.subr.mxu0 0.0
        %476 = vmatpush1.msra.mxu0 0.0
        %477 = vmatprep.subr.mxu0 0.0
        %478 = vmatpush1.msra.mxu0 0.0
        %479 = vmatprep.subr.mxu0 0.0
        %480 = vmatpush1.msra.mxu0 0.0
        %481 = vmatprep.subr.mxu0 0.0
        %482 = vmatpush1.msra.mxu0 0.0
        %483 = vmatprep.subr.mxu0 0.0
        %484 = vmatpush1.msra.mxu0 0.0
        %485 = vmatprep.subr.mxu0 0.0
        %486 = vmatpush1.msra.mxu0 0.0
        %487 = vmatprep.subr.mxu0 0.0
        %488 = vmatpush1.msra.mxu0 0.0
        %489 = vmatprep.subr.mxu0 0.0
        %490 = vmatpush1.msra.mxu0 0.0
        %491 = vmatprep.subr.mxu0 0.0
        %492 = vmatpush1.msra.mxu0 0.0
        %493 = vmatprep.subr.mxu0 0.0
        %494 = vmatpush1.msra.mxu0 0.0
        %495 = vmatprep.mubr.f32.mxu0 0.0
        %496 = vmatmul.mubr.f32.gmra.mrb[0].mxu0 %v426
        %v497 = vpop.f32.mrb[0].mxu0
        %v498 = vadd.f32 0.0, %v497
        %v499 = vpop.f32.mrb[0].mxu0
        %v500 = vadd.f32 0.0, %v499
        %501 = vmatprep.mubr.f32.mxu0 0.0
        %502 = vmatmul.mubr.f32.gmra.mrb[0].mxu0 %v429
        %v503 = vpop.f32.mrb[0].mxu0
        %v504 = vadd.f32 0.0, %v503
        %v505 = vpop.f32.mrb[0].mxu0
        %v506 = vadd.f32 0.0, %v505
        %507 = vdwg.mxu0
        %508 = vmatprep.subr.mxu0 0.0
        %509 = vmatpush1.msra.mxu0 %v418
        %510 = vmatprep.subr.mxu0 0.0
        %511 = vmatpush1.msra.mxu0 %v421
        %512 = vmatprep.subr.mxu0 0.0
        %513 = vmatpush1.msra.mxu0 0.0
        %514 = vmatprep.subr.mxu0 0.0
        %515 = vmatpush1.msra.mxu0 0.0
        %516 = vmatprep.subr.mxu0 0.0
        %517 = vmatpush1.msra.mxu0 0.0
        %518 = vmatprep.subr.mxu0 0.0
        %519 = vmatpush1.msra.mxu0 0.0
        %520 = vmatprep.subr.mxu0 0.0
        %521 = vmatpush1.msra.mxu0 0.0
        %522 = vmatprep.subr.mxu0 0.0
        %523 = vmatpush1.msra.mxu0 0.0
        %524 = vmatprep.subr.mxu0 0.0
        %525 = vmatpush1.msra.mxu0 0.0
        %526 = vmatprep.subr.mxu0 0.0
        %527 = vmatpush1.msra.mxu0 0.0
        %528 = vmatprep.subr.mxu0 0.0
        %529 = vmatpush1.msra.mxu0 0.0
        %530 = vmatprep.subr.mxu0 0.0
        %531 = vmatpush1.msra.mxu0 0.0
        %532 = vmatprep.subr.mxu0 0.0
        %533 = vmatpush1.msra.mxu0 0.0
        %534 = vmatprep.subr.mxu0 0.0
        %535 = vmatpush1.msra.mxu0 0.0
        %536 = vmatprep.subr.mxu0 0.0
        %537 = vmatpush1.msra.mxu0 0.0
        %538 = vmatprep.subr.mxu0 0.0
        %539 = vmatpush1.msra.mxu0 0.0
        %540 = vmatprep.subr.mxu0 0.0
        %541 = vmatpush1.msra.mxu0 0.0
        %542 = vmatprep.subr.mxu0 0.0
        %543 = vmatpush1.msra.mxu0 0.0
        %544 = vmatprep.subr.mxu0 0.0
        %545 = vmatpush1.msra.mxu0 0.0
        %546 = vmatprep.subr.mxu0 0.0
        %547 = vmatpush1.msra.mxu0 0.0
        %548 = vmatprep.subr.mxu0 0.0
        %549 = vmatpush1.msra.mxu0 0.0
        %550 = vmatprep.subr.mxu0 0.0
        %551 = vmatpush1.msra.mxu0 0.0
        %552 = vmatprep.subr.mxu0 0.0
        %553 = vmatpush1.msra.mxu0 0.0
        %554 = vmatprep.subr.mxu0 0.0
        %555 = vmatpush1.msra.mxu0 0.0
        %556 = vmatprep.subr.mxu0 0.0
        %557 = vmatpush1.msra.mxu0 0.0
        %558 = vmatprep.subr.mxu0 0.0
        %559 = vmatpush1.msra.mxu0 0.0
        %560 = vmatprep.subr.mxu0 0.0
        %561 = vmatpush1.msra.mxu0 0.0
        %562 = vmatprep.subr.mxu0 0.0
        %563 = vmatpush1.msra.mxu0 0.0
        %564 = vmatprep.subr.mxu0 0.0
        %565 = vmatpush1.msra.mxu0 0.0
        %566 = vmatprep.subr.mxu0 0.0
        %567 = vmatpush1.msra.mxu0 0.0
        %568 = vmatprep.subr.mxu0 0.0
        %569 = vmatpush1.msra.mxu0 0.0
        %570 = vmatprep.subr.mxu0 0.0
        %571 = vmatpush1.msra.mxu0 0.0
        %572 = vmatprep.mubr.f32.mxu0 0.0
        %573 = vmatmul.mubr.f32.gmra.mrb[0].mxu0 %v426
        %v574 = vpop.f32.mrb[0].mxu0
        %v575 = vadd.f32 0.0, %v574
        %v576 = vpop.f32.mrb[0].mxu0
        %577 = vmatprep.mubr.f32.mxu0 0.0
        %578 = vmatmul.mubr.f32.gmra.mrb[0].mxu0 %v429
        %v579 = vpop.f32.mrb[0].mxu0
        %v580 = vadd.f32 0.0, %v579
        %v581 = vpop.f32.mrb[0].mxu0
        %582 = vdwg.mxu0
        %v583 = vmul.f32 %v336, %v498
        %v584 = vmul.f32 %v337, %v500
        %v585 = vmul.f32 %v338, %v575
        %v586 = vmul.f32 %v339, %v504
        %v587 = vmul.f32 %v340, %v506
        %v588 = vmul.f32 %v341, %v580
        %v589 = vadd.f32 %v583, %v586
        %v590 = vrot.slane %v589, 4
        %v591 = vadd.f32 %v589, %v590
        %v592 = vrot.slane %v591, 2
        %v593 = vadd.f32 %v591, %v592
        %v594 = vrot.slane %v593, 1
        %v595 = vadd.f32 %v593, %v594
        %v596 = vadd.f32 %v584, %v587
        %v597 = vrot.slane %v596, 4
        %v598 = vadd.f32 %v596, %v597
        %v599 = vrot.slane %v598, 2
        %v600 = vadd.f32 %v598, %v599
        %v601 = vrot.slane %v600, 1
        %v602 = vadd.f32 %v600, %v601
        %v603 = vadd.f32 %v585, %v588
        %v604 = vrot.slane %v603, 4
        %v605 = vadd.f32 %v603, %v604
        %v606 = vrot.slane %v605, 2
        %v607 = vadd.f32 %v605, %v606
        %v608 = vrot.slane %v607, 1
        %v609 = vadd.f32 %v607, %v608
        %v611 = vlaneseq
        %v612 = vshrl.u32 %v611, 7
        %v613 = vsub.s32 0, %v612
        %v614 = vrot.slane %v261, %v613
        %v615 = vlaneseq
        %v616 = vshrl.u32 %v615, 7
        %v617 = vsub.s32 1, %v616
        %v618 = vrot.slane %v261, %v617
        %v619 = vlaneseq
        %v620 = vshrl.u32 %v619, 7
        %v621 = vsub.s32 2, %v620
        %v622 = vrot.slane %v261, %v621
        %v626 = vmul.f32 %v595, %v614
        %v627 = vmul.f32 %v602, %v618
        %v628 = vmul.f32 %v609, %v622
        %v632 = vcombine.low %v626, %v627
        %v634 = vunpack.c.l.s4 1966171168
        %v635 = vunpack.c.0.s8 %v634
        %v636 = vlaneseq
        %v637 = vshrl.u32 %v636, 7
        %v638 = vsub.s32 %v635, %v637
        %v639 = vrot.slane %v632, %v638
        %v641 = vunpack.c.l.s4 1966171168
        %v642 = vunpack.c.0.s8 %v641
        %v643 = vlaneseq
        %v644 = vshrl.u32 %v643, 7
        %v645 = vsub.s32 %v642, %v644
        %v646 = vrot.slane %v628, %v645
        %v647 = vcombine.low %v639, %v646
        %v649 = vunpack.c.l.s4 1966171168
        %v650 = vunpack.c.0.s8 %v649
        %v651 = vlaneseq
        %v652 = vshrl.u32 %v651, 7
        %v653 = vsub.s32 %v650, %v652
        %v654 = vrot.slane %v647, %v653
        %v656 = vlaneseq
        %vm657 = vcmp.ge.s32.totalorder %v656, 0
        %vm658 = vcmp.lt.s32.totalorder %v656, 384
        %vm659 = vmand %vm657, %vm658
        %660 = vst.msk [vmem:[%s245] sm:$0x7] %vm659, %v654
        %s661 = sand.u32 %s159, 1
        %s662 = scalar_lea.sflag [#allocation3], %s661
        %s663 = sand.u32 %s159, 1
        %s664 = smul.addr %s663, 3
        %s665 = scalar_lea.vmem [#allocation2], %s664
        // Predicated region
        $region45: #{tpu_custom_call.1} parent=43 // pred_check
          %p666 = pneg %p169
        $region46: #{tpu_custom_call.1} parent=43 // pred_check_branch
          %668 = sbr.rel (%p666) target = $region48
        $region47: #{tpu_custom_call.1} parent=43 // pred_region
          %s669 = smul.u32 3, %s20
          %s671 = ssub.s32 48, 48
          %672 = vsyncadd %s662, %s671
          %s673 = smul.addr %s669, 16
          %s674 = scalar_lea.hbm %s6, %s673
          %s676 = sshll.u32 %s665, 4
          %s677 = int_to_ptr.vmem [resolvable:$true] %s676
          %679 = dma.vmem_to_hbm [thread:$0]  %s677, 48, %s674, %s662
        $region48: #{tpu_custom_call.1} parent=43 // pred_fallthru
          _
      $region44: #{tpu_custom_call.1} parent=5 // pred_fallthru
        _
      %p680 = scmp.le.s32.totalorder 2, %s15
      // Predicated region
      $region49: #{tpu_custom_call.1} parent=5 // pred_check
        %p681 = pneg %p680
      $region50: #{tpu_custom_call.1} parent=5 // pred_check_branch
        %683 = sbr.rel (%p681) target = $region52
      $region51: #{tpu_custom_call.1} parent=5 // pred_region
        %s684 = ssub.s32 %s15, 2
        // Predicated region
        $region53: #{tpu_custom_call.1} parent=51 // pred_check
          %p685 = pneg %p175
        $region54: #{tpu_custom_call.1} parent=51 // pred_check_branch
          %687 = sbr.rel (%p685) target = $region56
        $region55: #{tpu_custom_call.1} parent=51 // pred_region
          %s688 = sand.u32 %s160, 1
          %s689 = scalar_lea.sflag [#allocation3], %s688
          %s690 = sand.u32 %s160, 1
          %s691 = smul.addr %s690, 3
          %s692 = scalar_lea.vmem [#allocation2], %s691
          %693 = dma.done %s689, 48
        $region56: #{tpu_custom_call.1} parent=51 // pred_fallthru
          _
      $region52: #{tpu_custom_call.1} parent=5 // pred_fallthru
        _
    $region6: #{tpu_custom_call.1} parent=1 // loop_footer
      %s19 = sadd.s32 1, %s15
    $region7: #{tpu_custom_call.1} parent=1 // loop_footer_branch
      %14 = sbr.rel target = $region3
    $region8: #{tpu_custom_call.1} parent=1 // loop_exit
      _
    %694 = vsyncpa [#allocation3], 1
    %s695 = scalar_lea.sflag [#allocation3], 1
    %696 = vsyncpa %s695, 1

// kernel: tpu_custom_call.1
$region0: #{tpu_custom_call.1}
  #allocation0 [shape = 'u32[]', space=smem, size = 0x4, offset = 0x4, fixed_abs, tag = 'smem constant byte address 0x4 - core index']
  #allocation1 [shape = 'u32[144,128]{1,0:T(1,128)}', space=vmem, size = 0x12000, scoped, tag = 'internal scratch']
  %s0 = inlined_call_operand.vmem [shape: f32[8,768], index: 0, kind: input, shape index: {}]
  %s1 = inlined_call_operand.vmem [shape: f32[16,1], index: 1, kind: input, shape index: {}]
  %s2 = inlined_call_operand.vmem [shape: f32[16,1], index: 2, kind: input, shape index: {}]
  %s3 = inlined_call_operand.vmem [shape: f32[16,1], index: 3, kind: input, shape index: {}]
  %s4 = inlined_call_operand.vmem [shape: f32[16,1], index: 4, kind: input, shape index: {}]
  %s5 = inlined_call_operand.vmem [shape: f32[16,16], index: 5, kind: input, shape index: {}]
  %s6 = inlined_call_operand.hbm [shape: f32[1,768], index: 6, kind: output, shape index: {}]
  %s7 = sld [smem:[#allocation0]]
  $region57: #{tpu_custom_call.1} parent=0
    _
  %s9 = ssub.s32 1, %s7
  %s10 = scalar_select 0, %s9, %s7
  $region1: #{tpu_custom_call.1} parent=0
    #allocation2 [shape = 'u8[3072]{0}', space=vmem, size = 0xc00, scoped, tag = 'output window, operand 0']
    #allocation3 [shape = 's32[2]{0}', space=sflag, size = 0x8, scoped, tag = 'scoped memory for tpu_custom_call.1']
    %11 = vsyncpa [#allocation3], 0
    %s12 = scalar_lea.sflag [#allocation3], 1
    %13 = vsyncpa %s12, 0
    loop: start=0, step=1, limit=4
    $region2: #{tpu_custom_call.1} parent=1 // loop_pre_header
      _
    $region3: #{tpu_custom_call.1} parent=1 // loop_header
      %s15 = sphi 0, %s19
      %p16 = scmp.ge.s32.totalorder %s15, 4
      %s25 = sphi 0, %s27
      %s28 = sphi 0, %s25
      %s29 = sphi 0, %s28
      %s45 = sphi 0, %s29
      %s49 = sphi 0, %s49
      %s51 = sphi 0, %s49
      %s52 = sphi 0, %s51
      %s66 = sphi 0, %s52
      %s70 = sphi 0, %s70
      %s72 = sphi 0, %s70
      %s73 = sphi 0, %s72
      %s87 = sphi 0, %s73
      %s91 = sphi 0, %s91
      %s93 = sphi 0, %s91
      %s94 = sphi 0, %s93
      %s108 = sphi 0, %s94
      %s112 = sphi 0, %s112
      %s114 = sphi 0, %s112
      %s115 = sphi 0, %s114
      %s129 = sphi 0, %s115
      %s133 = sphi 0, %s133
      %s135 = sphi 0, %s133
      %s136 = sphi 0, %s135
      %s150 = sphi 0, %s136
      %s156 = sphi 0, %s158
      %s159 = sphi 0, %s156
      %s160 = sphi 0, %s159
      %s176 = sphi 0, %s160
    $region4: #{tpu_custom_call.1} parent=1 // loop_header_branch
      %18 = sbr.rel (%p16) target = $region8
    $region5: #{tpu_custom_call.1} parent=1 // loop_body
      %s20 = ssub.s32 %s15, 1
      %s21 = ssub.s32 %s15, 2
      %s22 = sadd.s32 %s15, 1
      %s23 = ssub.s32 %s15, %s22
      %p24 = scmp.eq.s32.totalorder %s23, 0
      %s26 = sadd.s32 %s25, 1
      %s27 = scalar_select %p24, %s25, %s26
      %p30 = pneg %p24
      %p31 = scmp.eq.s32.totalorder %s15, 1
      %p32 = por %p30, %p31
      %p33 = scmp.ne.s32.totalorder %s25, %s28
      %p34 = scmp.eq.s32.totalorder %s15, 0
      %p35 = por %p33, %p34
      %p36 = scmp.ne.s32.totalorder %s25, %s28
      %p37 = scmp.eq.s32.totalorder %s20, 1
      %p38 = por %p36, %p37
      %p39 = scmp.ne.s32.totalorder %s28, %s29
      %p40 = scmp.eq.s32.totalorder %s20, 0
      %p41 = por %p39, %p40
      %p42 = scmp.ne.s32.totalorder %s28, %s29
      %p43 = scmp.eq.s32.totalorder %s21, 1
      %p44 = por %p42, %p43
      %p46 = scmp.ne.s32.totalorder %s29, %s45
      %p47 = scmp.eq.s32.totalorder %s21, 0
      %p48 = por %p46, %p47
      %s50 = sadd.s32 %s49, 1
      %p53 = scmp.eq.s32.totalorder %s15, 1
      %p54 = scmp.ne.s32.totalorder %s49, %s51
      %p55 = scmp.eq.s32.totalorder %s15, 0
      %p56 = por %p54, %p55
      %p57 = scmp.ne.s32.totalorder %s49, %s51
      %p58 = scmp.eq.s32.totalorder %s20, 1
      %p59 = por %p57, %p58
      %p60 = scmp.ne.s32.totalorder %s51, %s52
      %p61 = scmp.eq.s32.totalorder %s20, 0
      %p62 = por %p60, %p61
      %p63 = scmp.ne.s32.totalorder %s51, %s52
      %p64 = scmp.eq.s32.totalorder %s21, 1
      %p65 = por %p63, %p64
      %p67 = scmp.ne.s32.totalorder %s52, %s66
      %p68 = scmp.eq.s32.totalorder %s21, 0
      %p69 = por %p67, %p68
      %s71 = sadd.s32 %s70, 1
      %p74 = scmp.eq.s32.totalorder %s15, 1
      %p75 = scmp.ne.s32.totalorder %s70, %s72
      %p76 = scmp.eq.s32.totalorder %s15, 0
      %p77 = por %p75, %p76
      %p78 = scmp.ne.s32.totalorder %s70, %s72
      %p79 = scmp.eq.s32.totalorder %s20, 1
      %p80 = por %p78, %p79
      %p81 = scmp.ne.s32.totalorder %s72, %s73
      %p82 = scmp.eq.s32.totalorder %s20, 0
      %p83 = por %p81, %p82
      %p84 = scmp.ne.s32.totalorder %s72, %s73
      %p85 = scmp.eq.s32.totalorder %s21, 1
      %p86 = por %p84, %p85
      %p88 = scmp.ne.s32.totalorder %s73, %s87
      %p89 = scmp.eq.s32.totalorder %s21, 0
      %p90 = por %p88, %p89
      %s92 = sadd.s32 %s91, 1
      %p95 = scmp.eq.s32.totalorder %s15, 1
      %p96 = scmp.ne.s32.totalorder %s91, %s93
      %p97 = scmp.eq.s32.totalorder %s15, 0
      %p98 = por %p96, %p97
      %p99 = scmp.ne.s32.totalorder %s91, %s93
      %p100 = scmp.eq.s32.totalorder %s20, 1
      %p101 = por %p99, %p100
      %p102 = scmp.ne.s32.totalorder %s93, %s94
      %p103 = scmp.eq.s32.totalorder %s20, 0
      %p104 = por %p102, %p103
      %p105 = scmp.ne.s32.totalorder %s93, %s94
      %p106 = scmp.eq.s32.totalorder %s21, 1
      %p107 = por %p105, %p106
      %p109 = scmp.ne.s32.totalorder %s94, %s108
      %p110 = scmp.eq.s32.totalorder %s21, 0
      %p111 = por %p109, %p110
      %s113 = sadd.s32 %s112, 1
      %p116 = scmp.eq.s32.totalorder %s15, 1
      %p117 = scmp.ne.s32.totalorder %s112, %s114
      %p118 = scmp.eq.s32.totalorder %s15, 0
      %p119 = por %p117, %p118
      %p120 = scmp.ne.s32.totalorder %s112, %s114
      %p121 = scmp.eq.s32.totalorder %s20, 1
      %p122 = por %p120, %p121
      %p123 = scmp.ne.s32.totalorder %s114, %s115
      %p124 = scmp.eq.s32.totalorder %s20, 0
      %p125 = por %p123, %p124
      %p126 = scmp.ne.s32.totalorder %s114, %s115
      %p127 = scmp.eq.s32.totalorder %s21, 1
      %p128 = por %p126, %p127
      %p130 = scmp.ne.s32.totalorder %s115, %s129
      %p131 = scmp.eq.s32.totalorder %s21, 0
      %p132 = por %p130, %p131
      %s134 = sadd.s32 %s133, 1
      %p137 = scmp.eq.s32.totalorder %s15, 1
      %p138 = scmp.ne.s32.totalorder %s133, %s135
      %p139 = scmp.eq.s32.totalorder %s15, 0
      %p140 = por %p138, %p139
      %p141 = scmp.ne.s32.totalorder %s133, %s135
      %p142 = scmp.eq.s32.totalorder %s20, 1
      %p143 = por %p141, %p142
      %p144 = scmp.ne.s32.totalorder %s135, %s136
      %p145 = scmp.eq.s32.totalorder %s20, 0
      %p146 = por %p144, %p145
      %p147 = scmp.ne.s32.totalorder %s135, %s136
      %p148 = scmp.eq.s32.totalorder %s21, 1
      %p149 = por %p147, %p148
      %p151 = scmp.ne.s32.totalorder %s136, %s150
      %p152 = scmp.eq.s32.totalorder %s21, 0
      %p153 = por %p151, %p152
      %s154 = ssub.s32 %s15, %s22
      %p155 = scmp.eq.s32.totalorder %s154, 0
      %s157 = sadd.s32 %s156, 1
      %s158 = scalar_select %p155, %s156, %s157
      %p161 = pneg %p155
      %p162 = scmp.eq.s32.totalorder %s15, 1
      %p163 = por %p161, %p162
      %p164 = scmp.ne.s32.totalorder %s156, %s159
      %p165 = scmp.eq.s32.totalorder %s15, 0
      %p166 = por %p164, %p165
      %p167 = scmp.ne.s32.totalorder %s156, %s159
      %p168 = scmp.eq.s32.totalorder %s20, 1
      %p169 = por %p167, %p168
      %p170 = scmp.ne.s32.totalorder %s159, %s160
      %p171 = scmp.eq.s32.totalorder %s20, 0
      %p172 = por %p170, %p171
      %p173 = scmp.ne.s32.totalorder %s159, %s160
      %p174 = scmp.eq.s32.totalorder %s21, 1
      %p175 = por %p173, %p174
      %p177 = scmp.ne.s32.totalorder %s160, %s176
      %p178 = scmp.eq.s32.totalorder %s21, 0
      %p179 = por %p177, %p178
      %p180 = scmp.le.s32.totalorder 1, %s15
      %p181 = scmp.lt.s32.totalorder %s15, 3
      %p182 = pnand %p180, %p181
      %p183 = pneg %p182
      // Predicated region
      $region9: #{tpu_custom_call.1} parent=5 // pred_check
        _
      $region10: #{tpu_custom_call.1} parent=5 // pred_check_branch
        %185 = sbr.rel (%p182) target = $region12
      $region11: #{tpu_custom_call.1} parent=5 // pred_region
        %s186 = ssub.s32 %s15, 1
        // Predicated region
        $region13: #{tpu_custom_call.1} parent=11 // pred_check
          %p187 = pneg %p62
        $region14: #{tpu_custom_call.1} parent=11 // pred_check_branch
          %189 = sbr.rel (%p187) target = $region16
        $region15: #{tpu_custom_call.1} parent=11 // pred_region
          _
        $region16: #{tpu_custom_call.1} parent=11 // pred_fallthru
          _
        // Predicated region
        $region17: #{tpu_custom_call.1} parent=11 // pred_check
          %p190 = pneg %p83
        $region18: #{tpu_custom_call.1} parent=11 // pred_check_branch
          %192 = sbr.rel (%p190) target = $region20
        $region19: #{tpu_custom_call.1} parent=11 // pred_region
          _
        $region20: #{tpu_custom_call.1} parent=11 // pred_fallthru
          _
        // Predicated region
        $region21: #{tpu_custom_call.1} parent=11 // pred_check
          %p193 = pneg %p104
        $region22: #{tpu_custom_call.1} parent=11 // pred_check_branch
          %195 = sbr.rel (%p193) target = $region24
        $region23: #{tpu_custom_call.1} parent=11 // pred_region
          _
        $region24: #{tpu_custom_call.1} parent=11 // pred_fallthru
          _
        // Predicated region
        $region25: #{tpu_custom_call.1} parent=11 // pred_check
          %p196 = pneg %p125
        $region26: #{tpu_custom_call.1} parent=11 // pred_check_branch
          %198 = sbr.rel (%p196) target = $region28
        $region27: #{tpu_custom_call.1} parent=11 // pred_region
          _
        $region28: #{tpu_custom_call.1} parent=11 // pred_fallthru
          _
        // Predicated region
        $region29: #{tpu_custom_call.1} parent=11 // pred_check
          %p199 = pneg %p146
        $region30: #{tpu_custom_call.1} parent=11 // pred_check_branch
          %201 = sbr.rel (%p199) target = $region32
        $region31: #{tpu_custom_call.1} parent=11 // pred_region
          _
        $region32: #{tpu_custom_call.1} parent=11 // pred_fallthru
          _
      $region12: #{tpu_custom_call.1} parent=5 // pred_fallthru
        _
      %p202 = scmp.lt.s32.totalorder %s15, 2
      // Predicated region
      $region33: #{tpu_custom_call.1} parent=5 // pred_check
        %p203 = pneg %p202
      $region34: #{tpu_custom_call.1} parent=5 // pred_check_branch
        %205 = sbr.rel (%p203) target = $region36
      $region35: #{tpu_custom_call.1} parent=5 // pred_region
        // Predicated region
        $region37: #{tpu_custom_call.1} parent=35 // pred_check
          %p206 = pneg %p35
        $region38: #{tpu_custom_call.1} parent=35 // pred_check_branch
          %208 = sbr.rel (%p206) target = $region40
        $region39: #{tpu_custom_call.1} parent=35 // pred_region
          %s209 = smul.u32 3, %s15
          %p210 = scmp.lt.s32.totalorder %s209, 5
          %s211 = scalar_select %p210, %s209, 5
          %s212 = smul.addr %s211, 8
          %s213 = scalar_lea.vmem %s0, %s212
          %s214 = smul.u32 3, %s15
        $region40: #{tpu_custom_call.1} parent=35 // pred_fallthru
          _
      $region36: #{tpu_custom_call.1} parent=5 // pred_fallthru
        _
      %p215 = scmp.le.s32.totalorder 1, %s15
      %p216 = scmp.lt.s32.totalorder %s15, 3
      %p217 = pnand %p215, %p216
      %p218 = pneg %p217
      // Predicated region
      $region41: #{tpu_custom_call.1} parent=5 // pred_check
        _
      $region42: #{tpu_custom_call.1} parent=5 // pred_check_branch
        %220 = sbr.rel (%p217) target = $region44
      $region43: #{tpu_custom_call.1} parent=5 // pred_region
        %s221 = ssub.s32 %s15, 1
        %s222 = smul.u32 3, %s20
        %p223 = scmp.lt.s32.totalorder %s222, 5
        %s224 = scalar_select %p223, %s222, 5
        %s225 = smul.addr %s224, 8
        %s226 = scalar_lea.vmem %s0, %s225
        %p227 = pneg %p41
        %p228 = pneg %p38
        %p229 = pneg %p62
        %p230 = pneg %p59
        %p231 = pneg %p83
        %p232 = pneg %p80
        %p233 = pneg %p104
        %p234 = pneg %p101
        %p235 = pneg %p125
        %p236 = pneg %p122
        %p237 = pneg %p146
        %p238 = pneg %p143
        %p239 = pneg %p172
        %p240 = pneg %p169
        %s241 = sand.u32 %s159, 1
        %s242 = scalar_lea.sflag [#allocation3], %s241
        %s243 = sand.u32 %s159, 1
        %s244 = smul.addr %s243, 3
        %s245 = scalar_lea.vmem [#allocation2], %s244
        %s246 = smul.u32 3, %s20
        %p247 = scmp.lt.s32.totalorder %s246, 5
        %s248 = scalar_select %p247, %s246, 5
        %s249 = smul.addr %s248, 8
        %s250 = scalar_lea.vmem %s0, %s249
        %s251 = smul.u32 3, %s20
        %s252 = smul.u32 3, %s20
        %v253 = vld [vmem:[%s250] ss:$8 sm:$0x7]
        %s254 = scalar_lea.vmem %s250, 1
        %v255 = vld [vmem:[%s254] ss:$8 sm:$0x7]
        %s256 = scalar_lea.vmem %s250, 2
        %v257 = vld [vmem:[%s256] ss:$8 sm:$0x7]
        %s258 = scalar_lea.vmem %s250, 3
        %v259 = vld [vmem:[%s258] ss:$8 sm:$0x7]
        %s260 = scalar_lea.vmem %s250, 4
        %v261 = vld [vmem:[%s260] ss:$8 sm:$0x7]
        %v262 = vld [vmem:[%s2] sm:$0xff]
        %v263 = vld [vmem:[%s2 + $0x8] sm:$0xff]
        %v265 = vlaneseq
        %v266 = vshrl.u32 %v265, 7
        %v267 = vsub.s32 0, %v266
        %v268 = vrot.slane %v257, %v267
        %v269 = vlaneseq
        %v270 = vshrl.u32 %v269, 7
        %v271 = vsub.s32 1, %v270
        %v272 = vrot.slane %v257, %v271
        %v273 = vlaneseq
        %v274 = vshrl.u32 %v273, 7
        %v275 = vsub.s32 2, %v274
        %v276 = vrot.slane %v257, %v275
        %281 = vset.pattern.permute.xlu0 0
        %282 = vperm.xlu0 %281, %v262
        %v283 = vpop.permute.xlu0 %282
        %286 = vset.pattern.permute.xlu0 0
        %287 = vperm.xlu0 %286, %v263
        %v288 = vpop.permute.xlu0 %287
        %v290 = vmin.f32 %v268, %v283
        %v291 = vmin.f32 %v272, %v283
        %v292 = vmin.f32 %v276, %v283
        %v293 = vmin.f32 %v268, %v288
        %v294 = vmin.f32 %v272, %v288
        %v295 = vmin.f32 %v276, %v288
        %v296 = vld [vmem:[%s1] sm:$0xff]
        %v297 = vld [vmem:[%s1 + $0x8] sm:$0xff]
        %v299 = vlaneseq
        %v300 = vshrl.u32 %v299, 7
        %v301 = vsub.s32 0, %v300
        %v302 = vrot.slane %v253, %v301
        %v303 = vlaneseq
        %v304 = vshrl.u32 %v303, 7
        %v305 = vsub.s32 1, %v304
        %v306 = vrot.slane %v253, %v305
        %v307 = vlaneseq
        %v308 = vshrl.u32 %v307, 7
        %v309 = vsub.s32 2, %v308
        %v310 = vrot.slane %v253, %v309
        %315 = vset.pattern.permute.xlu0 0
        %316 = vperm.xlu0 %315, %v296
        %v317 = vpop.permute.xlu0 %316
        %320 = vset.pattern.permute.xlu0 0
        %321 = vperm.xlu0 %320, %v297
        %v322 = vpop.permute.xlu0 %321
        %v324 = vmax.f32 %v302, %v317
        %v325 = vmax.f32 %v306, %v317
        %v326 = vmax.f32 %v310, %v317
        %v327 = vmax.f32 %v302, %v322
        %v328 = vmax.f32 %v306, %v322
        %v329 = vmax.f32 %v310, %v322
        %v330 = vsub.f32 %v290, %v324
        %v331 = vsub.f32 %v291, %v325
        %v332 = vsub.f32 %v292, %v326
        %v333 = vsub.f32 %v293, %v327
        %v334 = vsub.f32 %v294, %v328
        %v335 = vsub.f32 %v295, %v329
        %v336 = vmax.f32 %v330, 0.0
        %v337 = vmax.f32 %v331, 0.0
        %v338 = vmax.f32 %v332, 0.0
        %v339 = vmax.f32 %v333, 0.0
        %v340 = vmax.f32 %v334, 0.0
        %v341 = vmax.f32 %v335, 0.0
        %v342 = vld [vmem:[%s4] sm:$0xff]
        %v343 = vld [vmem:[%s4 + $0x8] sm:$0xff]
        %v345 = vlaneseq
        %v346 = vshrl.u32 %v345, 7
        %v347 = vsub.s32 0, %v346
        %v348 = vrot.slane %v259, %v347
        %v349 = vlaneseq
        %v350 = vshrl.u32 %v349, 7
        %v351 = vsub.s32 1, %v350
        %v352 = vrot.slane %v259, %v351
        %v353 = vlaneseq
        %v354 = vshrl.u32 %v353, 7
        %v355 = vsub.s32 2, %v354
        %v356 = vrot.slane %v259, %v355
        %361 = vset.pattern.permute.xlu0 0
        %362 = vperm.xlu0 %361, %v342
        %v363 = vpop.permute.xlu0 %362
        %366 = vset.pattern.permute.xlu0 0
        %367 = vperm.xlu0 %366, %v343
        %v368 = vpop.permute.xlu0 %367
        %v370 = vmin.f32 %v348, %v363
        %v371 = vmin.f32 %v352, %v363
        %v372 = vmin.f32 %v356, %v363
        %v373 = vmin.f32 %v348, %v368
        %v374 = vmin.f32 %v352, %v368
        %v375 = vmin.f32 %v356, %v368
        %v376 = vld [vmem:[%s3] sm:$0xff]
        %v377 = vld [vmem:[%s3 + $0x8] sm:$0xff]
        %v379 = vlaneseq
        %v380 = vshrl.u32 %v379, 7
        %v381 = vsub.s32 0, %v380
        %v382 = vrot.slane %v255, %v381
        %v383 = vlaneseq
        %v384 = vshrl.u32 %v383, 7
        %v385 = vsub.s32 1, %v384
        %v386 = vrot.slane %v255, %v385
        %v387 = vlaneseq
        %v388 = vshrl.u32 %v387, 7
        %v389 = vsub.s32 2, %v388
        %v390 = vrot.slane %v255, %v389
        %395 = vset.pattern.permute.xlu0 0
        %396 = vperm.xlu0 %395, %v376
        %v397 = vpop.permute.xlu0 %396
        %400 = vset.pattern.permute.xlu0 0
        %401 = vperm.xlu0 %400, %v377
        %v402 = vpop.permute.xlu0 %401
        %v404 = vmax.f32 %v382, %v397
        %v405 = vmax.f32 %v386, %v397
        %v406 = vmax.f32 %v390, %v397
        %v407 = vmax.f32 %v382, %v402
        %v408 = vmax.f32 %v386, %v402
        %v409 = vmax.f32 %v390, %v402
        %v410 = vsub.f32 %v370, %v404
        %v411 = vsub.f32 %v371, %v405
        %v412 = vsub.f32 %v372, %v406
        %v413 = vsub.f32 %v373, %v407
        %v414 = vsub.f32 %v374, %v408
        %v415 = vsub.f32 %v375, %v409
        %v416 = vmax.f32 %v410, 0.0
        %v417 = vmax.f32 %v411, 0.0
        %v418 = vmax.f32 %v412, 0.0
        %v419 = vmax.f32 %v413, 0.0
        %v420 = vmax.f32 %v414, 0.0
        %v421 = vmax.f32 %v415, 0.0
        %v422 = vld [vmem:[%s5] sm:$0xff]
        %v423 = vld [vmem:[%s5 + $0x8] sm:$0xff]
        %vm424 = vcmask 130048
        %v426 = vsel %vm424, %v422, 0
        %v429 = vsel %vm424, %v423, 0
        %431 = vmatprep.subr.mxu0 %v417
        %432 = vmatpush1.msra.mxu0 %v416
        %433 = vmatprep.subr.mxu0 %v420
        %434 = vmatpush1.msra.mxu0 %v419
        %435 = vmatprep.subr.mxu0 0.0
        %436 = vmatpush1.msra.mxu0 0.0
        %437 = vmatprep.subr.mxu0 0.0
        %438 = vmatpush1.msra.mxu0 0.0
        %439 = vmatprep.subr.mxu0 0.0
        %440 = vmatpush1.msra.mxu0 0.0
        %441 = vmatprep.subr.mxu0 0.0
        %442 = vmatpush1.msra.mxu0 0.0
        %443 = vmatprep.subr.mxu0 0.0
        %444 = vmatpush1.msra.mxu0 0.0
        %445 = vmatprep.subr.mxu0 0.0
        %446 = vmatpush1.msra.mxu0 0.0
        %447 = vmatprep.subr.mxu0 0.0
        %448 = vmatpush1.msra.mxu0 0.0
        %449 = vmatprep.subr.mxu0 0.0
        %450 = vmatpush1.msra.mxu0 0.0
        %451 = vmatprep.subr.mxu0 0.0
        %452 = vmatpush1.msra.mxu0 0.0
        %453 = vmatprep.subr.mxu0 0.0
        %454 = vmatpush1.msra.mxu0 0.0
        %455 = vmatprep.subr.mxu0 0.0
        %456 = vmatpush1.msra.mxu0 0.0
        %457 = vmatprep.subr.mxu0 0.0
        %458 = vmatpush1.msra.mxu0 0.0
        %459 = vmatprep.subr.mxu0 0.0
        %460 = vmatpush1.msra.mxu0 0.0
        %461 = vmatprep.subr.mxu0 0.0
        %462 = vmatpush1.msra.mxu0 0.0
        %463 = vmatprep.subr.mxu0 0.0
        %464 = vmatpush1.msra.mxu0 0.0
        %465 = vmatprep.subr.mxu0 0.0
        %466 = vmatpush1.msra.mxu0 0.0
        %467 = vmatprep.subr.mxu0 0.0
        %468 = vmatpush1.msra.mxu0 0.0
        %469 = vmatprep.subr.mxu0 0.0
        %470 = vmatpush1.msra.mxu0 0.0
        %471 = vmatprep.subr.mxu0 0.0
        %472 = vmatpush1.msra.mxu0 0.0
        %473 = vmatprep.subr.mxu0 0.0
        %474 = vmatpush1.msra.mxu0 0.0
        %475 = vmatprep.subr.mxu0 0.0
        %476 = vmatpush1.msra.mxu0 0.0
        %477 = vmatprep.subr.mxu0 0.0
        %478 = vmatpush1.msra.mxu0 0.0
        %479 = vmatprep.subr.mxu0 0.0
        %480 = vmatpush1.msra.mxu0 0.0
        %481 = vmatprep.subr.mxu0 0.0
        %482 = vmatpush1.msra.mxu0 0.0
        %483 = vmatprep.subr.mxu0 0.0
        %484 = vmatpush1.msra.mxu0 0.0
        %485 = vmatprep.subr.mxu0 0.0
        %486 = vmatpush1.msra.mxu0 0.0
        %487 = vmatprep.subr.mxu0 0.0
        %488 = vmatpush1.msra.mxu0 0.0
        %489 = vmatprep.subr.mxu0 0.0
        %490 = vmatpush1.msra.mxu0 0.0
        %491 = vmatprep.subr.mxu0 0.0
        %492 = vmatpush1.msra.mxu0 0.0
        %493 = vmatprep.subr.mxu0 0.0
        %494 = vmatpush1.msra.mxu0 0.0
        %495 = vmatprep.mubr.f32.mxu0 0.0
        %496 = vmatmul.mubr.f32.gmra.mrb[0].mxu0 %v426
        %v497 = vpop.f32.mrb[0].mxu0
        %v498 = vadd.f32 0.0, %v497
        %v499 = vpop.f32.mrb[0].mxu0
        %v500 = vadd.f32 0.0, %v499
        %501 = vmatprep.mubr.f32.mxu0 0.0
        %502 = vmatmul.mubr.f32.gmra.mrb[0].mxu0 %v429
        %v503 = vpop.f32.mrb[0].mxu0
        %v504 = vadd.f32 0.0, %v503
        %v505 = vpop.f32.mrb[0].mxu0
        %v506 = vadd.f32 0.0, %v505
        %507 = vdwg.mxu0
        %508 = vmatprep.subr.mxu0 0.0
        %509 = vmatpush1.msra.mxu0 %v418
        %510 = vmatprep.subr.mxu0 0.0
        %511 = vmatpush1.msra.mxu0 %v421
        %512 = vmatprep.subr.mxu0 0.0
        %513 = vmatpush1.msra.mxu0 0.0
        %514 = vmatprep.subr.mxu0 0.0
        %515 = vmatpush1.msra.mxu0 0.0
        %516 = vmatprep.subr.mxu0 0.0
        %517 = vmatpush1.msra.mxu0 0.0
        %518 = vmatprep.subr.mxu0 0.0
        %519 = vmatpush1.msra.mxu0 0.0
        %520 = vmatprep.subr.mxu0 0.0
        %521 = vmatpush1.msra.mxu0 0.0
        %522 = vmatprep.subr.mxu0 0.0
        %523 = vmatpush1.msra.mxu0 0.0
        %524 = vmatprep.subr.mxu0 0.0
        %525 = vmatpush1.msra.mxu0 0.0
        %526 = vmatprep.subr.mxu0 0.0
        %527 = vmatpush1.msra.mxu0 0.0
        %528 = vmatprep.subr.mxu0 0.0
        %529 = vmatpush1.msra.mxu0 0.0
        %530 = vmatprep.subr.mxu0 0.0
        %531 = vmatpush1.msra.mxu0 0.0
        %532 = vmatprep.subr.mxu0 0.0
        %533 = vmatpush1.msra.mxu0 0.0
        %534 = vmatprep.subr.mxu0 0.0
        %535 = vmatpush1.msra.mxu0 0.0
        %536 = vmatprep.subr.mxu0 0.0
        %537 = vmatpush1.msra.mxu0 0.0
        %538 = vmatprep.subr.mxu0 0.0
        %539 = vmatpush1.msra.mxu0 0.0
        %540 = vmatprep.subr.mxu0 0.0
        %541 = vmatpush1.msra.mxu0 0.0
        %542 = vmatprep.subr.mxu0 0.0
        %543 = vmatpush1.msra.mxu0 0.0
        %544 = vmatprep.subr.mxu0 0.0
        %545 = vmatpush1.msra.mxu0 0.0
        %546 = vmatprep.subr.mxu0 0.0
        %547 = vmatpush1.msra.mxu0 0.0
        %548 = vmatprep.subr.mxu0 0.0
        %549 = vmatpush1.msra.mxu0 0.0
        %550 = vmatprep.subr.mxu0 0.0
        %551 = vmatpush1.msra.mxu0 0.0
        %552 = vmatprep.subr.mxu0 0.0
        %553 = vmatpush1.msra.mxu0 0.0
        %554 = vmatprep.subr.mxu0 0.0
        %555 = vmatpush1.msra.mxu0 0.0
        %556 = vmatprep.subr.mxu0 0.0
        %557 = vmatpush1.msra.mxu0 0.0
        %558 = vmatprep.subr.mxu0 0.0
        %559 = vmatpush1.msra.mxu0 0.0
        %560 = vmatprep.subr.mxu0 0.0
        %561 = vmatpush1.msra.mxu0 0.0
        %562 = vmatprep.subr.mxu0 0.0
        %563 = vmatpush1.msra.mxu0 0.0
        %564 = vmatprep.subr.mxu0 0.0
        %565 = vmatpush1.msra.mxu0 0.0
        %566 = vmatprep.subr.mxu0 0.0
        %567 = vmatpush1.msra.mxu0 0.0
        %568 = vmatprep.subr.mxu0 0.0
        %569 = vmatpush1.msra.mxu0 0.0
        %570 = vmatprep.subr.mxu0 0.0
        %571 = vmatpush1.msra.mxu0 0.0
        %572 = vmatprep.mubr.f32.mxu0 0.0
        %573 = vmatmul.mubr.f32.gmra.mrb[0].mxu0 %v426
        %v574 = vpop.f32.mrb[0].mxu0
        %v575 = vadd.f32 0.0, %v574
        %v576 = vpop.f32.mrb[0].mxu0
        %577 = vmatprep.mubr.f32.mxu0 0.0
        %578 = vmatmul.mubr.f32.gmra.mrb[0].mxu0 %v429
        %v579 = vpop.f32.mrb[0].mxu0
        %v580 = vadd.f32 0.0, %v579
        %v581 = vpop.f32.mrb[0].mxu0
        %582 = vdwg.mxu0
        %v583 = vmul.f32 %v336, %v498
        %v584 = vmul.f32 %v337, %v500
        %v585 = vmul.f32 %v338, %v575
        %v586 = vmul.f32 %v339, %v504
        %v587 = vmul.f32 %v340, %v506
        %v588 = vmul.f32 %v341, %v580
        %v589 = vadd.f32 %v583, %v586
        %v590 = vrot.slane %v589, 4
        %v591 = vadd.f32 %v589, %v590
        %v592 = vrot.slane %v591, 2
        %v593 = vadd.f32 %v591, %v592
        %v594 = vrot.slane %v593, 1
        %v595 = vadd.f32 %v593, %v594
        %v596 = vadd.f32 %v584, %v587
        %v597 = vrot.slane %v596, 4
        %v598 = vadd.f32 %v596, %v597
        %v599 = vrot.slane %v598, 2
        %v600 = vadd.f32 %v598, %v599
        %v601 = vrot.slane %v600, 1
        %v602 = vadd.f32 %v600, %v601
        %v603 = vadd.f32 %v585, %v588
        %v604 = vrot.slane %v603, 4
        %v605 = vadd.f32 %v603, %v604
        %v606 = vrot.slane %v605, 2
        %v607 = vadd.f32 %v605, %v606
        %v608 = vrot.slane %v607, 1
        %v609 = vadd.f32 %v607, %v608
        %v611 = vlaneseq
        %v612 = vshrl.u32 %v611, 7
        %v613 = vsub.s32 0, %v612
        %v614 = vrot.slane %v261, %v613
        %v615 = vlaneseq
        %v616 = vshrl.u32 %v615, 7
        %v617 = vsub.s32 1, %v616
        %v618 = vrot.slane %v261, %v617
        %v619 = vlaneseq
        %v620 = vshrl.u32 %v619, 7
        %v621 = vsub.s32 2, %v620
        %v622 = vrot.slane %v261, %v621
        %v626 = vmul.f32 %v595, %v614
        %v627 = vmul.f32 %v602, %v618
        %v628 = vmul.f32 %v609, %v622
        %v632 = vcombine.low %v626, %v627
        %v634 = vunpack.c.l.s4 1966171168
        %v635 = vunpack.c.0.s8 %v634
        %v636 = vlaneseq
        %v637 = vshrl.u32 %v636, 7
        %v638 = vsub.s32 %v635, %v637
        %v639 = vrot.slane %v632, %v638
        %v641 = vunpack.c.l.s4 1966171168
        %v642 = vunpack.c.0.s8 %v641
        %v643 = vlaneseq
        %v644 = vshrl.u32 %v643, 7
        %v645 = vsub.s32 %v642, %v644
        %v646 = vrot.slane %v628, %v645
        %v647 = vcombine.low %v639, %v646
        %v649 = vunpack.c.l.s4 1966171168
        %v650 = vunpack.c.0.s8 %v649
        %v651 = vlaneseq
        %v652 = vshrl.u32 %v651, 7
        %v653 = vsub.s32 %v650, %v652
        %v654 = vrot.slane %v647, %v653
        %v656 = vlaneseq
        %vm657 = vcmp.ge.s32.totalorder %v656, 0
        %vm658 = vcmp.lt.s32.totalorder %v656, 384
        %vm659 = vmand %vm657, %vm658
        %660 = vst.msk [vmem:[%s245] sm:$0x7] %vm659, %v654
        %s661 = sand.u32 %s159, 1
        %s662 = scalar_lea.sflag [#allocation3], %s661
        %s663 = sand.u32 %s159, 1
        %s664 = smul.addr %s663, 3
        %s665 = scalar_lea.vmem [#allocation2], %s664
        // Predicated region
        $region45: #{tpu_custom_call.1} parent=43 // pred_check
          %p666 = pneg %p169
        $region46: #{tpu_custom_call.1} parent=43 // pred_check_branch
          %668 = sbr.rel (%p666) target = $region48
        $region47: #{tpu_custom_call.1} parent=43 // pred_region
          %s669 = smul.u32 3, %s20
          %s671 = ssub.s32 48, 48
          %672 = vsyncadd %s662, %s671
          %s673 = smul.addr %s669, 16
          %s674 = scalar_lea.hbm %s6, %s673
          %s676 = sshll.u32 %s665, 4
          %s677 = int_to_ptr.vmem [resolvable:$true] %s676
          %679 = dma.vmem_to_hbm [thread:$0]  %s677, 48, %s674, %s662
        $region48: #{tpu_custom_call.1} parent=43 // pred_fallthru
          _
      $region44: #{tpu_custom_call.1} parent=5 // pred_fallthru
        _
      %p680 = scmp.le.s32.totalorder 2, %s15
      // Predicated region
      $region49: #{tpu_custom_call.1} parent=5 // pred_check
        %p681 = pneg %p680
      $region50: #{tpu_custom_call.1} parent=5 // pred_check_branch
        %683 = sbr.rel (%p681) target = $region52
      $region51: #{tpu_custom_call.1} parent=5 // pred_region
        %s684 = ssub.s32 %s15, 2
        // Predicated region
        $region53: #{tpu_custom_call.1} parent=51 // pred_check
          %p685 = pneg %p175
        $region54: #{tpu_custom_call.1} parent=51 // pred_check_branch
          %687 = sbr.rel (%p685) target = $region56
        $region55: #{tpu_custom_call.1} parent=51 // pred_region
          %s688 = sand.u32 %s160, 1
          %s689 = scalar_lea.sflag [#allocation3], %s688
          %s690 = sand.u32 %s160, 1
          %s691 = smul.addr %s690, 3
          %s692 = scalar_lea.vmem [#allocation2], %s691
          %693 = dma.done %s689, 48
        $region56: #{tpu_custom_call.1} parent=51 // pred_fallthru
          _
      $region52: #{tpu_custom_call.1} parent=5 // pred_fallthru
        _
    $region6: #{tpu_custom_call.1} parent=1 // loop_footer
      %s19 = sadd.s32 1, %s15
    $region7: #{tpu_custom_call.1} parent=1 // loop_footer_branch
      %14 = sbr.rel target = $region3
    $region8: #{tpu_custom_call.1} parent=1 // loop_exit
      _
    %694 = vsyncpa [#allocation3], 1
    %s695 = scalar_lea.sflag [#allocation3], 1
    %696 = vsyncpa %s695, 1

</llo_original>
